<compile_context>
chip_gen: v7x
topology: tpu7x:2x2x1
jax: 0.10.0
libtpu: 0.0.40
codegen_flags: <defaults>
</compile_context>

<pallas_src>
import functools

import jax
import jax.numpy as jnp
from jax.experimental import pallas as pl
from jax.experimental.pallas import tpu as pltpu


def _mtafm_fused_kernel(x_ref, wblk_ref, bblk_ref, scale_ref, wgblk_ref,
                        bgr_ref, gmask_ref, eall_ref, out_ref,
                        *, T, D, L, n_layers):
    """One grid step == one batch block; all layers unrolled in-body."""
    TD = T * D
    h = x_ref[...]                                            # (BB, TD) f32

    for layer in range(n_layers):                             # fully unrolled
        # ---- shared-per-task MLP: block-diagonal bf16 MXU matmuls ----------
        for l in range(L):
            h = jnp.dot(h.astype(jnp.bfloat16), wblk_ref[layer, l],
                        preferred_element_type=jnp.float32)
            h = jnp.maximum(h + bblk_ref[layer, l], 0.0)      # Linear + ReLU

        # ---- expert integration: per-task scalar scale (may be negative) ---
        task_out = h * scale_ref[layer]                       # (BB, TD)

        # ---- gate logits for all T tasks in one matmul ----------------------
        logits = jnp.dot(task_out, wgblk_ref[layer],
                         preferred_element_type=jnp.float32) + bgr_ref[layer]

        # ---- vectorized per-task softmax ------------------------------------
        # Global row max is exact (softmax is shift-invariant within each
        # T-wide group); one XLU reduce + one EUP exp over the whole slab.
        m = jnp.max(logits, axis=-1, keepdims=True)           # (BB, 1)
        e = jnp.exp(logits - m)                               # (BB, T*T)
        denom = jnp.dot(e, gmask_ref[...],
                        preferred_element_type=jnp.float32)   # per-group sums
        # approx reciprocal error ~2^-12; use approx=False for tighter parity.
        gates = e * pl.reciprocal(denom, approx=True)         # (BB, T*T)

        # ---- bmm(gates, task_out) as expansion matmul + lane rolls ----------
        ge = jnp.dot(gates, eall_ref[...],
                     preferred_element_type=jnp.float32)      # (BB, T*TD)
        acc = ge[:, 0:TD] * task_out                          # k = 0 (no roll)
        for k in range(1, T):
            rk = pltpu.roll(task_out, shift=k * D, axis=1)    # XLU lane rotate
            acc = acc + ge[:, k * TD:(k + 1) * TD] * rk       # vreg-aligned slice
        h = acc + task_out                                    # gate_out + residual

    out_ref[...] = h.astype(out_ref.dtype)                    # single writeback


def mtafm_forward(x, packed, *, T, batch_block=None):
    """x: (B, T, D) f32.  packed: layer-stacked, block-packed params."""
    wblk, bblk, scale, wgblk, bgr, gmask, eall = packed
    n_layers, L, TD, _ = wblk.shape
    TT = wgblk.shape[-1]
    B = x.shape[0]
    D = TD // T
    if batch_block is None:
        batch_block = min(B, 256)       # B-block before scaling batch (VMEM cap)
    assert B % batch_block == 0
    x_flat = x.reshape(B, TD)                                 # lane-dense I/O

    kernel = functools.partial(_mtafm_fused_kernel, T=T, D=D, L=L,
                               n_layers=n_layers)
    out_flat = pl.pallas_call(
        kernel,
        out_shape=jax.ShapeDtypeStruct((B, TD), jnp.float32),
        grid=(B // batch_block,),                             # parallel batch axis
        in_specs=[
            pl.BlockSpec((batch_block, TD), lambda i: (i, 0)),          # x
            pl.BlockSpec((n_layers, L, TD, TD), lambda i: (0, 0, 0, 0)),  # MLP W (bf16)
            pl.BlockSpec((n_layers, L, 1, TD), lambda i: (0, 0, 0, 0)),   # MLP b
            pl.BlockSpec((n_layers, 1, TD), lambda i: (0, 0, 0)),         # integration scale
            pl.BlockSpec((n_layers, TD, TT), lambda i: (0, 0, 0)),        # gate W (block-packed)
            pl.BlockSpec((n_layers, 1, TT), lambda i: (0, 0, 0)),         # gate b (task-repeated)
            pl.BlockSpec((TT, TT), lambda i: (0, 0)),                     # softmax group mask
            pl.BlockSpec((TT, T * TD), lambda i: (0, 0)),                 # gate expansion matrix
        ],
        out_specs=pl.BlockSpec((batch_block, TD), lambda i: (i, 0)),
        compiler_params=pltpu.CompilerParams(
            dimension_semantics=("parallel",),
            vmem_limit_bytes=32 * 1024 * 1024),
    )(x_flat, wblk, bblk, scale, wgblk, bgr, gmask, eall)
    return out_flat.reshape(x.shape)


def pack_params(params):
    """Stack per-layer params along a leading layer axis and block-pack them.

    Input per layer: (w (T,L,D,D), b (T,L,D), s (1,T), wg_t (D,T), bg (1,T)).
    Output: (wblk (LY,L,TD,TD) bf16, bblk (LY,L,1,TD), scale (LY,1,TD),
             wgblk (LY,TD,TT), bgr (LY,1,TT), gmask (TT,TT), eall (TT,T*TD)).
    """
    T, L, D, _ = params[0][0].shape
    TD, TT = T * D, T * T
    Ws, Bs, Ss, Gs, GBs = [], [], [], [], []
    for (w, b, s, wg_t, bg) in params:
        # Block-diagonal MLP weights: wblk[l, t*D+di, t*D+do] = w[t, l, di, do]
        wb = jnp.zeros((L, TD, TD), jnp.float32)
        for t in range(T):
            wb = wb.at[:, t * D:(t + 1) * D, t * D:(t + 1) * D].set(w[t])
        Ws.append(wb)
        # Concatenated biases: bblk[l, 0, t*D+d] = b[t, l, d]
        Bs.append(jnp.transpose(b, (1, 0, 2)).reshape(L, 1, TD))
        # Integration scale per lane: scale[0, t*D+d] = s[0, t]
        Ss.append(jnp.repeat(s[0], D).reshape(1, TD))
        # Block-packed gate weight: wgblk[t*D+d, t*T+g] = wg_t[d, g]
        wgb = jnp.zeros((TD, TT), jnp.float32)
        for t in range(T):
            wgb = wgb.at[t * D:(t + 1) * D, t * T:(t + 1) * T].set(wg_t)
        Gs.append(wgb)
        # Gate bias repeated per task: bgr[0, t*T+g] = bg[0, g]
        GBs.append(jnp.tile(bg[0], (T,)).reshape(1, TT))
    wblk = jnp.stack(Ws).astype(jnp.bfloat16)   # bf16 halves weight DMA bytes
    bblk, scale, wgblk, bgr = (jnp.stack(Bs), jnp.stack(Ss),
                               jnp.stack(Gs), jnp.stack(GBs))
    # Softmax group mask: gmask[i, j] = 1 iff columns i, j belong to same task.
    idx = jnp.arange(TT)
    gmask = (idx[:, None] // T == idx[None, :] // T).astype(jnp.float32)
    # Gate expansion matrix: (gates @ eall)[:, k*TD + t*D + d]
    #                            = gates[:, t*T + ((t-k) % T)]
    eall = jnp.zeros((TT, T * TD), jnp.float32)
    for k in range(T):
        for t in range(T):
            g = (t - k) % T
            eall = eall.at[t * T + g,
                           k * TD + t * D: k * TD + (t + 1) * D].set(1.0)
    return (wblk, bblk, scale, wgblk, bgr, gmask, eall)


def mtafm_reference(x, params):
    """Pure-JAX replica of the PyTorch forward (experts-share-weights collapse).

    Uses the same bf16 weights / bf16 matmul inputs with f32 accumulation as
    the kernel so the comparison is apples-to-apples.
    """
    for (w, b, s, wg_t, bg) in params:
        B, T, D = x.shape
        L = w.shape[1]
        w_bf = w.astype(jnp.bfloat16)
        rows = []
        for i in range(T):
            h = x[:, i, :]
            for l in range(L):
                h = jax.nn.relu(
                    jnp.dot(h.astype(jnp.bfloat16), w_bf[i, l],
                            preferred_element_type=jnp.float32) + b[i, l])
            rows.append(h * s[0, i])
        task_out = jnp.stack(rows, axis=1)
        logits = jnp.einsum('btd,dg->btg', task_out, wg_t,
                            precision=jax.lax.Precision.HIGHEST) + bg
        gates = jax.nn.softmax(logits, axis=-1)
        gate_out = jnp.einsum('btg,bgd->btd', gates, task_out,
                              precision=jax.lax.Precision.HIGHEST)
        x = gate_out + task_out
    return x


def init_params(key, *, layers, risk_num, mlp_level, input_len,
                task_support_expert_num, risk_task_expert_num, layer_out_len):
    T = risk_num + 1
    D = input_len
    per_task_E = [risk_task_expert_num] * risk_num + [task_support_expert_num]
    params = []
    for layer in range(layers):
        assert layer_out_len[layer] == D, \
            "MTAFM forward only type-checks when layer_out_len == input_len"
        key, kw, kb, kg, kgb = jax.random.split(key, 5)
        w = jax.random.normal(kw, (T, mlp_level, D, D), jnp.float32) * (1.0 / jnp.sqrt(D))
        b = jax.random.normal(kb, (T, mlp_level, D), jnp.float32) * 0.01
        # Integration weights: uniform(-1/sqrt(E), 1/sqrt(E)); experts within a
        # task are the same module, so einsum('bex,e->bx') = sum(weights)*out.
        scales = []
        for E in per_task_E:
            key, ki = jax.random.split(key)
            lim = 1.0 / jnp.sqrt(float(E))
            iw = jax.random.uniform(ki, (E,), jnp.float32, minval=-lim, maxval=lim)
            scales.append(jnp.sum(iw))
        s = jnp.stack(scales).reshape(1, T)
        wg = jax.random.normal(kg, (T, D), jnp.float32) * (1.0 / jnp.sqrt(D))  # torch (out, in)
        bg = jax.random.normal(kgb, (T,), jnp.float32) * 0.01
        params.append((w, b, s, wg.T, bg.reshape(1, T)))
    return params


if __name__ == "__main__":
    # Config consistent with the module:
    #   input_len=32, layers=2, risk_num=3, mlp_level=2,
    #   task_support_expert_num=2, risk_task_expert_num=2, layer_out_len=[32,32]
    # T*D = 4*32 = 128 -> activations are exactly one lane-dense (B, 128) slab.
    B, D = 8, 32
    layers, risk_num, mlp_level = 2, 3, 2
    task_support_expert_num, risk_task_expert_num = 2, 2
    T = risk_num + 1

    key = jax.random.PRNGKey(0)
    key, kx = jax.random.split(key)
    x = jax.random.normal(kx, (B, T, D), jnp.float32)  # inputs[:, i, :] per task

    params = init_params(
        key,
        layers=layers, risk_num=risk_num, mlp_level=mlp_level, input_len=D,
        task_support_expert_num=task_support_expert_num,
        risk_task_expert_num=risk_task_expert_num,
        layer_out_len=[D] * layers,
    )
    packed = pack_params(params)

    out = mtafm_forward(x, packed, T=T)
    out = jax.block_until_ready(out)

    ref = mtafm_reference(x, params)
    assert out.shape == (B, T, D)
    assert jnp.allclose(out, ref, atol=1e-2, rtol=1e-2), "Pallas kernel mismatch vs reference"

    print("KERNEL_OK")
</pallas_src>

<mosaic_0001>
module attributes {stable_mosaic.version = 11 : i64} {
  func.func @_mtafm_fused_kernel(%arg0: i32, %arg1: memref<8x128xf32, #tpu.memory_space<vmem>>, %arg2: memref<2x2x128x128xbf16, #tpu.memory_space<vmem>>, %arg3: memref<2x2x1x128xf32, #tpu.memory_space<vmem>>, %arg4: memref<2x1x128xf32, #tpu.memory_space<vmem>>, %arg5: memref<2x128x16xf32, #tpu.memory_space<vmem>>, %arg6: memref<2x1x16xf32, #tpu.memory_space<vmem>>, %arg7: memref<16x16xf32, #tpu.memory_space<vmem>>, %arg8: memref<16x512xf32, #tpu.memory_space<vmem>>, %arg9: memref<8x128xf32, #tpu.memory_space<vmem>>) attributes {dimension_semantics = [#tpu.dimension_semantics<parallel>], iteration_bounds = array<i64: 1>, scalar_prefetch = 0 : i64, scratch_operands = 0 : i64, tpu.core_type = #tpu.core_type<tc>, window_params = [{transform_indices = @transform_0, window_bounds = array<i64: 8, 128>}, {pipeline_mode = #tpu.pipeline_mode<synchronous>, transform_indices = @transform_1, window_bounds = array<i64: 2, 2, 128, 128>}, {pipeline_mode = #tpu.pipeline_mode<synchronous>, transform_indices = @transform_2, window_bounds = array<i64: 2, 2, 1, 128>}, {pipeline_mode = #tpu.pipeline_mode<synchronous>, transform_indices = @transform_3, window_bounds = array<i64: 2, 1, 128>}, {pipeline_mode = #tpu.pipeline_mode<synchronous>, transform_indices = @transform_4, window_bounds = array<i64: 2, 128, 16>}, {pipeline_mode = #tpu.pipeline_mode<synchronous>, transform_indices = @transform_5, window_bounds = array<i64: 2, 1, 16>}, {pipeline_mode = #tpu.pipeline_mode<synchronous>, transform_indices = @transform_6, window_bounds = array<i64: 16, 16>}, {pipeline_mode = #tpu.pipeline_mode<synchronous>, transform_indices = @transform_7, window_bounds = array<i64: 16, 512>}, {transform_indices = @transform_8, window_bounds = array<i64: 8, 128>}]} {
    %c0 = arith.constant 0 : index
    %c0_0 = arith.constant 0 : index
    %0 = vector.load %arg1[%c0, %c0_0] : memref<8x128xf32, #tpu.memory_space<vmem>>, vector<8x128xf32>
    %1 = arith.truncf %0 : vector<8x128xf32> to vector<8x128xbf16>
    %c0_1 = arith.constant 0 : index
    %c0_2 = arith.constant 0 : index
    %c0_3 = arith.constant 0 : index
    %c0_4 = arith.constant 0 : index
    %2 = vector.load %arg2[%c0_1, %c0_2, %c0_3, %c0_4] : memref<2x2x128x128xbf16, #tpu.memory_space<vmem>>, vector<1x1x128x128xbf16>
    %3 = vector.shape_cast %2 : vector<1x1x128x128xbf16> to vector<128x128xbf16>
    %cst = arith.constant dense<0.000000e+00> : vector<8x128xf32>
    %4 = tpu.matmul %1, %3, %cst {dimension_numbers = #tpu.dot_dimension_numbers<[1], [0], [0], [1], [0, 0, 1, 1], [], []>} : vector<8x128xbf16>, vector<128x128xbf16>, vector<8x128xf32> -> vector<8x128xf32>
    %c0_5 = arith.constant 0 : index
    %c0_6 = arith.constant 0 : index
    %c0_7 = arith.constant 0 : index
    %c0_8 = arith.constant 0 : index
    %5 = vector.load %arg3[%c0_5, %c0_6, %c0_7, %c0_8] : memref<2x2x1x128xf32, #tpu.memory_space<vmem>>, vector<1x1x1x128xf32>
    %6 = vector.shape_cast %5 : vector<1x1x1x128xf32> to vector<1x128xf32>
    %7 = vector.broadcast %6 : vector<1x128xf32> to vector<8x128xf32>
    %8 = arith.addf %4, %7 : vector<8x128xf32>
    %cst_9 = arith.constant 0.000000e+00 : f32
    %9 = vector.broadcast %cst_9 : f32 to vector<8x128xf32>
    %10 = arith.maximumf %8, %9 : vector<8x128xf32>
    %11 = arith.truncf %10 : vector<8x128xf32> to vector<8x128xbf16>
    %c0_10 = arith.constant 0 : index
    %c1 = arith.constant 1 : index
    %c0_11 = arith.constant 0 : index
    %c0_12 = arith.constant 0 : index
    %12 = vector.load %arg2[%c0_10, %c1, %c0_11, %c0_12] : memref<2x2x128x128xbf16, #tpu.memory_space<vmem>>, vector<1x1x128x128xbf16>
    %13 = vector.shape_cast %12 : vector<1x1x128x128xbf16> to vector<128x128xbf16>
    %cst_13 = arith.constant dense<0.000000e+00> : vector<8x128xf32>
    %14 = tpu.matmul %11, %13, %cst_13 {dimension_numbers = #tpu.dot_dimension_numbers<[1], [0], [0], [1], [0, 0, 1, 1], [], []>} : vector<8x128xbf16>, vector<128x128xbf16>, vector<8x128xf32> -> vector<8x128xf32>
    %c0_14 = arith.constant 0 : index
    %c1_15 = arith.constant 1 : index
    %c0_16 = arith.constant 0 : index
    %c0_17 = arith.constant 0 : index
    %15 = vector.load %arg3[%c0_14, %c1_15, %c0_16, %c0_17] : memref<2x2x1x128xf32, #tpu.memory_space<vmem>>, vector<1x1x1x128xf32>
    %16 = vector.shape_cast %15 : vector<1x1x1x128xf32> to vector<1x128xf32>
    %17 = vector.broadcast %16 : vector<1x128xf32> to vector<8x128xf32>
    %18 = arith.addf %14, %17 : vector<8x128xf32>
    %cst_18 = arith.constant 0.000000e+00 : f32
    %19 = vector.broadcast %cst_18 : f32 to vector<8x128xf32>
    %20 = arith.maximumf %18, %19 : vector<8x128xf32>
    %c0_19 = arith.constant 0 : index
    %c0_20 = arith.constant 0 : index
    %c0_21 = arith.constant 0 : index
    %21 = vector.load %arg4[%c0_19, %c0_20, %c0_21] : memref<2x1x128xf32, #tpu.memory_space<vmem>>, vector<1x1x128xf32>
    %22 = vector.shape_cast %21 : vector<1x1x128xf32> to vector<1x128xf32>
    %23 = vector.broadcast %22 : vector<1x128xf32> to vector<8x128xf32>
    %24 = arith.mulf %20, %23 : vector<8x128xf32>
    %c0_22 = arith.constant 0 : index
    %c0_23 = arith.constant 0 : index
    %c0_24 = arith.constant 0 : index
    %25 = vector.load %arg5[%c0_22, %c0_23, %c0_24] : memref<2x128x16xf32, #tpu.memory_space<vmem>>, vector<1x128x16xf32>
    %26 = vector.shape_cast %25 : vector<1x128x16xf32> to vector<128x16xf32>
    %cst_25 = arith.constant dense<0.000000e+00> : vector<8x16xf32>
    %27 = tpu.matmul %24, %26, %cst_25 {dimension_numbers = #tpu.dot_dimension_numbers<[1], [0], [0], [1], [0, 0, 1, 1], [], []>} : vector<8x128xf32>, vector<128x16xf32>, vector<8x16xf32> -> vector<8x16xf32>
    %c0_26 = arith.constant 0 : index
    %c0_27 = arith.constant 0 : index
    %c0_28 = arith.constant 0 : index
    %28 = vector.load %arg6[%c0_26, %c0_27, %c0_28] : memref<2x1x16xf32, #tpu.memory_space<vmem>>, vector<1x1x16xf32>
    %29 = vector.shape_cast %28 : vector<1x1x16xf32> to vector<1x16xf32>
    %30 = vector.broadcast %29 : vector<1x16xf32> to vector<8x16xf32>
    %31 = arith.addf %27, %30 : vector<8x16xf32>
    %cst_29 = arith.constant dense<0xFF800000> : vector<8xf32>
    %32 = vector.multi_reduction <maximumf>, %31, %cst_29 [1] : vector<8x16xf32> to vector<8xf32>
    %33 = vector.shape_cast %32 : vector<8xf32> to vector<8x1xf32>
    %34 = vector.broadcast %33 : vector<8x1xf32> to vector<8x16xf32>
    %35 = arith.subf %31, %34 : vector<8x16xf32>
    %36 = math.exp %35 : vector<8x16xf32>
    %c0_30 = arith.constant 0 : index
    %c0_31 = arith.constant 0 : index
    %37 = vector.load %arg7[%c0_30, %c0_31] : memref<16x16xf32, #tpu.memory_space<vmem>>, vector<16x16xf32>
    %cst_32 = arith.constant dense<0.000000e+00> : vector<8x16xf32>
    %38 = tpu.matmul %36, %37, %cst_32 {dimension_numbers = #tpu.dot_dimension_numbers<[1], [0], [0], [1], [0, 0, 1, 1], [], []>} : vector<8x16xf32>, vector<16x16xf32>, vector<8x16xf32> -> vector<8x16xf32>
    %39 = tpu.reciprocal %38 {approx = true} : vector<8x16xf32> -> vector<8x16xf32>
    %40 = arith.mulf %36, %39 : vector<8x16xf32>
    %c0_33 = arith.constant 0 : index
    %c0_34 = arith.constant 0 : index
    %41 = vector.load %arg8[%c0_33, %c0_34] : memref<16x512xf32, #tpu.memory_space<vmem>>, vector<16x512xf32>
    %cst_35 = arith.constant dense<0.000000e+00> : vector<8x512xf32>
    %42 = tpu.matmul %40, %41, %cst_35 {dimension_numbers = #tpu.dot_dimension_numbers<[1], [0], [0], [1], [0, 0, 1, 1], [], []>} : vector<8x16xf32>, vector<16x512xf32>, vector<8x512xf32> -> vector<8x512xf32>
    %43 = vector.extract_strided_slice %42 {offsets = [0, 0], sizes = [8, 128], strides = [1, 1]} : vector<8x512xf32> to vector<8x128xf32>
    %44 = arith.mulf %43, %24 : vector<8x128xf32>
    %c32_i32 = arith.constant 32 : i32
    %45 = tpu.dynamic_rotate %24 by %c32_i32 dim 1 : vector<8x128xf32>, i32 -> vector<8x128xf32>
    %46 = vector.extract_strided_slice %42 {offsets = [0, 128], sizes = [8, 128], strides = [1, 1]} : vector<8x512xf32> to vector<8x128xf32>
    %47 = arith.mulf %46, %45 : vector<8x128xf32>
    %48 = arith.addf %44, %47 : vector<8x128xf32>
    %c64_i32 = arith.constant 64 : i32
    %49 = tpu.dynamic_rotate %24 by %c64_i32 dim 1 : vector<8x128xf32>, i32 -> vector<8x128xf32>
    %50 = vector.extract_strided_slice %42 {offsets = [0, 256], sizes = [8, 128], strides = [1, 1]} : vector<8x512xf32> to vector<8x128xf32>
    %51 = arith.mulf %50, %49 : vector<8x128xf32>
    %52 = arith.addf %48, %51 : vector<8x128xf32>
    %c96_i32 = arith.constant 96 : i32
    %53 = tpu.dynamic_rotate %24 by %c96_i32 dim 1 : vector<8x128xf32>, i32 -> vector<8x128xf32>
    %54 = vector.extract_strided_slice %42 {offsets = [0, 384], sizes = [8, 128], strides = [1, 1]} : vector<8x512xf32> to vector<8x128xf32>
    %55 = arith.mulf %54, %53 : vector<8x128xf32>
    %56 = arith.addf %52, %55 : vector<8x128xf32>
    %57 = arith.addf %56, %24 : vector<8x128xf32>
    %58 = arith.truncf %57 : vector<8x128xf32> to vector<8x128xbf16>
    %c1_36 = arith.constant 1 : index
    %c0_37 = arith.constant 0 : index
    %c0_38 = arith.constant 0 : index
    %c0_39 = arith.constant 0 : index
    %59 = vector.load %arg2[%c1_36, %c0_37, %c0_38, %c0_39] : memref<2x2x128x128xbf16, #tpu.memory_space<vmem>>, vector<1x1x128x128xbf16>
    %60 = vector.shape_cast %59 : vector<1x1x128x128xbf16> to vector<128x128xbf16>
    %cst_40 = arith.constant dense<0.000000e+00> : vector<8x128xf32>
    %61 = tpu.matmul %58, %60, %cst_40 {dimension_numbers = #tpu.dot_dimension_numbers<[1], [0], [0], [1], [0, 0, 1, 1], [], []>} : vector<8x128xbf16>, vector<128x128xbf16>, vector<8x128xf32> -> vector<8x128xf32>
    %c1_41 = arith.constant 1 : index
    %c0_42 = arith.constant 0 : index
    %c0_43 = arith.constant 0 : index
    %c0_44 = arith.constant 0 : index
    %62 = vector.load %arg3[%c1_41, %c0_42, %c0_43, %c0_44] : memref<2x2x1x128xf32, #tpu.memory_space<vmem>>, vector<1x1x1x128xf32>
    %63 = vector.shape_cast %62 : vector<1x1x1x128xf32> to vector<1x128xf32>
    %64 = vector.broadcast %63 : vector<1x128xf32> to vector<8x128xf32>
    %65 = arith.addf %61, %64 : vector<8x128xf32>
    %cst_45 = arith.constant 0.000000e+00 : f32
    %66 = vector.broadcast %cst_45 : f32 to vector<8x128xf32>
    %67 = arith.maximumf %65, %66 : vector<8x128xf32>
    %68 = arith.truncf %67 : vector<8x128xf32> to vector<8x128xbf16>
    %c1_46 = arith.constant 1 : index
    %c1_47 = arith.constant 1 : index
    %c0_48 = arith.constant 0 : index
    %c0_49 = arith.constant 0 : index
    %69 = vector.load %arg2[%c1_46, %c1_47, %c0_48, %c0_49] : memref<2x2x128x128xbf16, #tpu.memory_space<vmem>>, vector<1x1x128x128xbf16>
    %70 = vector.shape_cast %69 : vector<1x1x128x128xbf16> to vector<128x128xbf16>
    %cst_50 = arith.constant dense<0.000000e+00> : vector<8x128xf32>
    %71 = tpu.matmul %68, %70, %cst_50 {dimension_numbers = #tpu.dot_dimension_numbers<[1], [0], [0], [1], [0, 0, 1, 1], [], []>} : vector<8x128xbf16>, vector<128x128xbf16>, vector<8x128xf32> -> vector<8x128xf32>
    %c1_51 = arith.constant 1 : index
    %c1_52 = arith.constant 1 : index
    %c0_53 = arith.constant 0 : index
    %c0_54 = arith.constant 0 : index
    %72 = vector.load %arg3[%c1_51, %c1_52, %c0_53, %c0_54] : memref<2x2x1x128xf32, #tpu.memory_space<vmem>>, vector<1x1x1x128xf32>
    %73 = vector.shape_cast %72 : vector<1x1x1x128xf32> to vector<1x128xf32>
    %74 = vector.broadcast %73 : vector<1x128xf32> to vector<8x128xf32>
    %75 = arith.addf %71, %74 : vector<8x128xf32>
    %cst_55 = arith.constant 0.000000e+00 : f32
    %76 = vector.broadcast %cst_55 : f32 to vector<8x128xf32>
    %77 = arith.maximumf %75, %76 : vector<8x128xf32>
    %c1_56 = arith.constant 1 : index
    %c0_57 = arith.constant 0 : index
    %c0_58 = arith.constant 0 : index
    %78 = vector.load %arg4[%c1_56, %c0_57, %c0_58] : memref<2x1x128xf32, #tpu.memory_space<vmem>>, vector<1x1x128xf32>
    %79 = vector.shape_cast %78 : vector<1x1x128xf32> to vector<1x128xf32>
    %80 = vector.broadcast %79 : vector<1x128xf32> to vector<8x128xf32>
    %81 = arith.mulf %77, %80 : vector<8x128xf32>
    %c1_59 = arith.constant 1 : index
    %c0_60 = arith.constant 0 : index
    %c0_61 = arith.constant 0 : index
    %82 = vector.load %arg5[%c1_59, %c0_60, %c0_61] : memref<2x128x16xf32, #tpu.memory_space<vmem>>, vector<1x128x16xf32>
    %83 = vector.shape_cast %82 : vector<1x128x16xf32> to vector<128x16xf32>
    %cst_62 = arith.constant dense<0.000000e+00> : vector<8x16xf32>
    %84 = tpu.matmul %81, %83, %cst_62 {dimension_numbers = #tpu.dot_dimension_numbers<[1], [0], [0], [1], [0, 0, 1, 1], [], []>} : vector<8x128xf32>, vector<128x16xf32>, vector<8x16xf32> -> vector<8x16xf32>
    %c1_63 = arith.constant 1 : index
    %c0_64 = arith.constant 0 : index
    %c0_65 = arith.constant 0 : index
    %85 = vector.load %arg6[%c1_63, %c0_64, %c0_65] : memref<2x1x16xf32, #tpu.memory_space<vmem>>, vector<1x1x16xf32>
    %86 = vector.shape_cast %85 : vector<1x1x16xf32> to vector<1x16xf32>
    %87 = vector.broadcast %86 : vector<1x16xf32> to vector<8x16xf32>
    %88 = arith.addf %84, %87 : vector<8x16xf32>
    %cst_66 = arith.constant dense<0xFF800000> : vector<8xf32>
    %89 = vector.multi_reduction <maximumf>, %88, %cst_66 [1] : vector<8x16xf32> to vector<8xf32>
    %90 = vector.shape_cast %89 : vector<8xf32> to vector<8x1xf32>
    %91 = vector.broadcast %90 : vector<8x1xf32> to vector<8x16xf32>
    %92 = arith.subf %88, %91 : vector<8x16xf32>
    %93 = math.exp %92 : vector<8x16xf32>
    %c0_67 = arith.constant 0 : index
    %c0_68 = arith.constant 0 : index
    %94 = vector.load %arg7[%c0_67, %c0_68] : memref<16x16xf32, #tpu.memory_space<vmem>>, vector<16x16xf32>
    %cst_69 = arith.constant dense<0.000000e+00> : vector<8x16xf32>
    %95 = tpu.matmul %93, %94, %cst_69 {dimension_numbers = #tpu.dot_dimension_numbers<[1], [0], [0], [1], [0, 0, 1, 1], [], []>} : vector<8x16xf32>, vector<16x16xf32>, vector<8x16xf32> -> vector<8x16xf32>
    %96 = tpu.reciprocal %95 {approx = true} : vector<8x16xf32> -> vector<8x16xf32>
    %97 = arith.mulf %93, %96 : vector<8x16xf32>
    %c0_70 = arith.constant 0 : index
    %c0_71 = arith.constant 0 : index
    %98 = vector.load %arg8[%c0_70, %c0_71] : memref<16x512xf32, #tpu.memory_space<vmem>>, vector<16x512xf32>
    %cst_72 = arith.constant dense<0.000000e+00> : vector<8x512xf32>
    %99 = tpu.matmul %97, %98, %cst_72 {dimension_numbers = #tpu.dot_dimension_numbers<[1], [0], [0], [1], [0, 0, 1, 1], [], []>} : vector<8x16xf32>, vector<16x512xf32>, vector<8x512xf32> -> vector<8x512xf32>
    %100 = vector.extract_strided_slice %99 {offsets = [0, 0], sizes = [8, 128], strides = [1, 1]} : vector<8x512xf32> to vector<8x128xf32>
    %101 = arith.mulf %100, %81 : vector<8x128xf32>
    %c32_i32_73 = arith.constant 32 : i32
    %102 = tpu.dynamic_rotate %81 by %c32_i32_73 dim 1 : vector<8x128xf32>, i32 -> vector<8x128xf32>
    %103 = vector.extract_strided_slice %99 {offsets = [0, 128], sizes = [8, 128], strides = [1, 1]} : vector<8x512xf32> to vector<8x128xf32>
    %104 = arith.mulf %103, %102 : vector<8x128xf32>
    %105 = arith.addf %101, %104 : vector<8x128xf32>
    %c64_i32_74 = arith.constant 64 : i32
    %106 = tpu.dynamic_rotate %81 by %c64_i32_74 dim 1 : vector<8x128xf32>, i32 -> vector<8x128xf32>
    %107 = vector.extract_strided_slice %99 {offsets = [0, 256], sizes = [8, 128], strides = [1, 1]} : vector<8x512xf32> to vector<8x128xf32>
    %108 = arith.mulf %107, %106 : vector<8x128xf32>
    %109 = arith.addf %105, %108 : vector<8x128xf32>
    %c96_i32_75 = arith.constant 96 : i32
    %110 = tpu.dynamic_rotate %81 by %c96_i32_75 dim 1 : vector<8x128xf32>, i32 -> vector<8x128xf32>
    %111 = vector.extract_strided_slice %99 {offsets = [0, 384], sizes = [8, 128], strides = [1, 1]} : vector<8x512xf32> to vector<8x128xf32>
    %112 = arith.mulf %111, %110 : vector<8x128xf32>
    %113 = arith.addf %109, %112 : vector<8x128xf32>
    %114 = arith.addf %113, %81 : vector<8x128xf32>
    %c0_76 = arith.constant 0 : index
    %c0_77 = arith.constant 0 : index
    %115 = vector.load %arg9[%c0_76, %c0_77] : memref<8x128xf32, #tpu.memory_space<vmem>>, vector<8x128xf32>
    tpu.vector_store %arg9[%c0_76, %c0_77], %114 {strides = array<i32>} : memref<8x128xf32, #tpu.memory_space<vmem>>, vector<8x128xf32>,
    return
  }
  func.func @transform_0(%arg0: i32) -> (i32, i32) {
    %c0_i32 = arith.constant 0 : i32
    %c0_i32_0 = arith.constant 0 : i32
    return %arg0, %c0_i32 : i32, i32
  }
  func.func @transform_1(%arg0: i32) -> (i32, i32, i32, i32) {
    %c0_i32 = arith.constant 0 : i32
    %c0_i32_0 = arith.constant 0 : i32
    %c0_i32_1 = arith.constant 0 : i32
    %c0_i32_2 = arith.constant 0 : i32
    %c0_i32_3 = arith.constant 0 : i32
    return %c0_i32, %c0_i32_0, %c0_i32_1, %c0_i32_2 : i32, i32, i32, i32
  }
  func.func @transform_2(%arg0: i32) -> (i32, i32, i32, i32) {
    %c0_i32 = arith.constant 0 : i32
    %c0_i32_0 = arith.constant 0 : i32
    %c0_i32_1 = arith.constant 0 : i32
    %c0_i32_2 = arith.constant 0 : i32
    %c0_i32_3 = arith.constant 0 : i32
    return %c0_i32, %c0_i32_0, %c0_i32_1, %c0_i32_2 : i32, i32, i32, i32
  }
  func.func @transform_3(%arg0: i32) -> (i32, i32, i32) {
    %c0_i32 = arith.constant 0 : i32
    %c0_i32_0 = arith.constant 0 : i32
    %c0_i32_1 = arith.constant 0 : i32
    %c0_i32_2 = arith.constant 0 : i32
    return %c0_i32, %c0_i32_0, %c0_i32_1 : i32, i32, i32
  }
  func.func @transform_4(%arg0: i32) -> (i32, i32, i32) {
    %c0_i32 = arith.constant 0 : i32
    %c0_i32_0 = arith.constant 0 : i32
    %c0_i32_1 = arith.constant 0 : i32
    %c0_i32_2 = arith.constant 0 : i32
    return %c0_i32, %c0_i32_0, %c0_i32_1 : i32, i32, i32
  }
  func.func @transform_5(%arg0: i32) -> (i32, i32, i32) {
    %c0_i32 = arith.constant 0 : i32
    %c0_i32_0 = arith.constant 0 : i32
    %c0_i32_1 = arith.constant 0 : i32
    %c0_i32_2 = arith.constant 0 : i32
    return %c0_i32, %c0_i32_0, %c0_i32_1 : i32, i32, i32
  }
  func.func @transform_6(%arg0: i32) -> (i32, i32) {
    %c0_i32 = arith.constant 0 : i32
    %c0_i32_0 = arith.constant 0 : i32
    %c0_i32_1 = arith.constant 0 : i32
    return %c0_i32, %c0_i32_0 : i32, i32
  }
  func.func @transform_7(%arg0: i32) -> (i32, i32) {
    %c0_i32 = arith.constant 0 : i32
    %c0_i32_0 = arith.constant 0 : i32
    %c0_i32_1 = arith.constant 0 : i32
    return %c0_i32, %c0_i32_0 : i32, i32
  }
  func.func @transform_8(%arg0: i32) -> (i32, i32) {
    %c0_i32 = arith.constant 0 : i32
    %c0_i32_0 = arith.constant 0 : i32
    return %arg0, %c0_i32 : i32, i32
  }
}

</mosaic_0001>

<llo_original>
// kernel: tpu_custom_call.1
$region0: #{tpu_custom_call.1}
  #allocation0 [shape = 'u32[]', space=smem, size = 0x4, offset = 0x4, fixed_abs, tag = 'smem constant byte address 0x4 - core index']
  #allocation1 [shape = 'u32[144,128]{1,0:T(1,128)}', space=vmem, size = 0x12000, scoped, tag = 'internal scratch']
  %s0 = inlined_call_operand.vmem [shape: f32[8,128], index: 0, kind: input, shape index: {}]
  %s1 = inlined_call_operand.vmem [shape: bf16[2,2,128,128], index: 1, kind: input, shape index: {}]
  %s2 = inlined_call_operand.vmem [shape: f32[2,2,1,128], index: 2, kind: input, shape index: {}]
  %s3 = inlined_call_operand.vmem [shape: f32[2,1,128], index: 3, kind: input, shape index: {}]
  %s4 = inlined_call_operand.vmem [shape: f32[2,128,16], index: 4, kind: input, shape index: {}]
  %s5 = inlined_call_operand.vmem [shape: f32[2,1,16], index: 5, kind: input, shape index: {}]
  %s6 = inlined_call_operand.vmem [shape: f32[16,16], index: 6, kind: input, shape index: {}]
  %s7 = inlined_call_operand.hbm [shape: f32[16,512], index: 7, kind: input, shape index: {}]
  %s8 = inlined_call_operand.hbm [shape: f32[8,128], index: 8, kind: output, shape index: {}]
  %s9 = sld [smem:[#allocation0]]
  $region46: #{tpu_custom_call.1} parent=0
    _
  %s11 = ssub.s32 1, %s9
  %s12 = scalar_select 0, %s11, %s9
  $region1: #{tpu_custom_call.1} parent=0
    #allocation2 [shape = 'u8[32768]{0}', space=vmem, size = 0x8000, scoped, tag = 'input window, operand 7, single buffered']
    #allocation3 [shape = 's32[1]{0}', space=sflag, size = 0x4, scoped, tag = 'scoped memory for tpu_custom_call.1']
    #allocation4 [shape = 's32[1]{0}', space=sflag, size = 0x4, scoped, tag = 'scoped memory for tpu_custom_call.1']
    #allocation5 [shape = 'u8[4096]{0}', space=vmem, size = 0x1000, scoped, tag = 'output window, operand 0, single buffered']
    %13 = vsyncpa [#allocation3], 0
    %14 = vsyncpa [#allocation4], 0
    // Predicated region
    $region2: #{tpu_custom_call.1} parent=1 // pred_check
      _
    $region3: #{tpu_custom_call.1} parent=1 // pred_check_branch
      %16 = sbr.rel (0) target = $region5
    $region4: #{tpu_custom_call.1} parent=1 // pred_region
      _
    $region5: #{tpu_custom_call.1} parent=1 // pred_fallthru
      _
    // Predicated region
    $region6: #{tpu_custom_call.1} parent=1 // pred_check
      _
    $region7: #{tpu_custom_call.1} parent=1 // pred_check_branch
      %18 = sbr.rel (0) target = $region9
    $region8: #{tpu_custom_call.1} parent=1 // pred_region
      _
    $region9: #{tpu_custom_call.1} parent=1 // pred_fallthru
      _
    // Predicated region
    $region10: #{tpu_custom_call.1} parent=1 // pred_check
      _
    $region11: #{tpu_custom_call.1} parent=1 // pred_check_branch
      %20 = sbr.rel (0) target = $region13
    $region12: #{tpu_custom_call.1} parent=1 // pred_region
      _
    $region13: #{tpu_custom_call.1} parent=1 // pred_fallthru
      _
    // Predicated region
    $region14: #{tpu_custom_call.1} parent=1 // pred_check
      _
    $region15: #{tpu_custom_call.1} parent=1 // pred_check_branch
      %22 = sbr.rel (0) target = $region17
    $region16: #{tpu_custom_call.1} parent=1 // pred_region
      _
    $region17: #{tpu_custom_call.1} parent=1 // pred_fallthru
      _
    // Predicated region
    $region18: #{tpu_custom_call.1} parent=1 // pred_check
      _
    $region19: #{tpu_custom_call.1} parent=1 // pred_check_branch
      %24 = sbr.rel (0) target = $region21
    $region20: #{tpu_custom_call.1} parent=1 // pred_region
      _
    $region21: #{tpu_custom_call.1} parent=1 // pred_fallthru
      _
    // Predicated region
    $region22: #{tpu_custom_call.1} parent=1 // pred_check
      _
    $region23: #{tpu_custom_call.1} parent=1 // pred_check_branch
      %26 = sbr.rel (0) target = $region25
    $region24: #{tpu_custom_call.1} parent=1 // pred_region
      _
    $region25: #{tpu_custom_call.1} parent=1 // pred_fallthru
      _
    // Predicated region
    $region26: #{tpu_custom_call.1} parent=1 // pred_check
      _
    $region27: #{tpu_custom_call.1} parent=1 // pred_check_branch
      %28 = sbr.rel (0) target = $region29
    $region28: #{tpu_custom_call.1} parent=1 // pred_region
      _
    $region29: #{tpu_custom_call.1} parent=1 // pred_fallthru
      _
    // Predicated region
    $region30: #{tpu_custom_call.1} parent=1 // pred_check
      _
    $region31: #{tpu_custom_call.1} parent=1 // pred_check_branch
      %30 = sbr.rel (0) target = $region33
    $region32: #{tpu_custom_call.1} parent=1 // pred_region
      %s32 = ssub.s32 1024, 1024
      %33 = vsyncadd [#allocation3], %s32
      %s34 = sshll.u32 [#allocation2], 4
      %s35 = int_to_ptr.vmem [resolvable:$true] %s34
      %40 = dma.hbm_to_vmem [thread:$0]  %s7, 1024, %s35, [#allocation3], 512, 512, 32
    $region33: #{tpu_custom_call.1} parent=1 // pred_fallthru
      _
    // Predicated region
    $region34: #{tpu_custom_call.1} parent=1 // pred_check
      _
    $region35: #{tpu_custom_call.1} parent=1 // pred_check_branch
      %42 = sbr.rel (0) target = $region37
    $region36: #{tpu_custom_call.1} parent=1 // pred_region
      %43 = dma.done [#allocation3], 1024
    $region37: #{tpu_custom_call.1} parent=1 // pred_fallthru
      _
    %v45 = vld [vmem:[%s0] sm:$0xff]
    %v46 = vpack.c.bf16 %v45, %v45
    %v47 = vld [vmem:[%s1] sm:$0xf]
    %v48 = vld [vmem:[%s1 + $0x4] sm:$0xf]
    %v49 = vld [vmem:[%s1 + $0x8] sm:$0xf]
    %v50 = vld [vmem:[%s1 + $0xc] sm:$0xf]
    %v51 = vld [vmem:[%s1 + $0x10] sm:$0xf]
    %v52 = vld [vmem:[%s1 + $0x14] sm:$0xf]
    %v53 = vld [vmem:[%s1 + $0x18] sm:$0xf]
    %v54 = vld [vmem:[%s1 + $0x1c] sm:$0xf]
    %v55 = vld [vmem:[%s1 + $0x20] sm:$0xf]
    %v56 = vld [vmem:[%s1 + $0x24] sm:$0xf]
    %v57 = vld [vmem:[%s1 + $0x28] sm:$0xf]
    %v58 = vld [vmem:[%s1 + $0x2c] sm:$0xf]
    %v59 = vld [vmem:[%s1 + $0x30] sm:$0xf]
    %v60 = vld [vmem:[%s1 + $0x34] sm:$0xf]
    %v61 = vld [vmem:[%s1 + $0x38] sm:$0xf]
    %v62 = vld [vmem:[%s1 + $0x3c] sm:$0xf]
    %v63 = vld [vmem:[%s2] sm:$0x1]
    %v65 = vlaneseq
    %v66 = vshrl.u32 %v65, 7
    %v67 = vsub.s32 0, %v66
    %v68 = vrot.slane %v63, %v67
    %v86 = vunpack.c.l.b16 %v47
    %v87 = vunpack.c.l.b16 %v48
    %v88 = vunpack.c.l.b16 %v49
    %v89 = vunpack.c.l.b16 %v50
    %v90 = vunpack.c.l.b16 %v51
    %v91 = vunpack.c.l.b16 %v52
    %v92 = vunpack.c.l.b16 %v53
    %v93 = vunpack.c.l.b16 %v54
    %v94 = vunpack.c.l.b16 %v55
    %v95 = vunpack.c.l.b16 %v56
    %v96 = vunpack.c.l.b16 %v57
    %v97 = vunpack.c.l.b16 %v58
    %v98 = vunpack.c.l.b16 %v59
    %v99 = vunpack.c.l.b16 %v60
    %v100 = vunpack.c.l.b16 %v61
    %v101 = vunpack.c.l.b16 %v62
    %v102 = vpack.c.b16 %v87, %v86
    %v103 = vpack.c.b16 %v89, %v88
    %v104 = vpack.c.b16 %v91, %v90
    %v105 = vpack.c.b16 %v93, %v92
    %v106 = vpack.c.b16 %v95, %v94
    %v107 = vpack.c.b16 %v97, %v96
    %v108 = vpack.c.b16 %v99, %v98
    %v109 = vpack.c.b16 %v101, %v100
    %118 = vmatprep.subr.bf16.mxu0 0
    %119 = vmatpush1.bf16.msra.mxu0 %v102
    %120 = vmatprep.subr.bf16.mxu0 0
    %121 = vmatpush1.bf16.msra.mxu0 %v103
    %122 = vmatprep.subr.bf16.mxu0 0
    %123 = vmatpush1.bf16.msra.mxu0 %v104
    %124 = vmatprep.subr.bf16.mxu0 0
    %125 = vmatpush1.bf16.msra.mxu0 %v105
    %126 = vmatprep.subr.bf16.mxu0 0
    %127 = vmatpush1.bf16.msra.mxu0 %v106
    %128 = vmatprep.subr.bf16.mxu0 0
    %129 = vmatpush1.bf16.msra.mxu0 %v107
    %130 = vmatprep.subr.bf16.mxu0 0
    %131 = vmatpush1.bf16.msra.mxu0 %v108
    %132 = vmatprep.subr.bf16.mxu0 0
    %133 = vmatpush1.bf16.msra.mxu0 %v109
    %134 = vmatprep.subr.bf16.mxu0 0
    %135 = vmatpush1.bf16.msra.mxu0 0
    %136 = vmatprep.subr.bf16.mxu0 0
    %137 = vmatpush1.bf16.msra.mxu0 0
    %138 = vmatprep.subr.bf16.mxu0 0
    %139 = vmatpush1.bf16.msra.mxu0 0
    %140 = vmatprep.subr.bf16.mxu0 0
    %141 = vmatpush1.bf16.msra.mxu0 0
    %142 = vmatprep.subr.bf16.mxu0 0
    %143 = vmatpush1.bf16.msra.mxu0 0
    %144 = vmatprep.subr.bf16.mxu0 0
    %145 = vmatpush1.bf16.msra.mxu0 0
    %146 = vmatprep.subr.bf16.mxu0 0
    %147 = vmatpush1.bf16.msra.mxu0 0
    %148 = vmatprep.subr.bf16.mxu0 0
    %149 = vmatpush1.bf16.msra.mxu0 0
    %150 = vmatprep.mubr.bf16.mxu0 0
    %151 = vmatmul.mubr.bf16.gmra.mrb[0].mxu0 %v46
    %v152 = vpop.f32.mrb[0].mxu0
    %v153 = vadd.f32 %v68, %v152
    %v154 = vpop.f32.mrb[0].mxu0
    %v155 = vpop.f32.mrb[0].mxu0
    %v156 = vpop.f32.mrb[0].mxu0
    %157 = vdwg.mxu0
    %v158 = vmax.f32 %v153, 0.0
    %v159 = vpack.c.bf16 %v158, %v158
    %s160 = scalar_lea.vmem %s1, 64
    %v161 = vld [vmem:[%s160] sm:$0xf]
    %v162 = vld [vmem:[%s160 + $0x4] sm:$0xf]
    %v163 = vld [vmem:[%s160 + $0x8] sm:$0xf]
    %v164 = vld [vmem:[%s160 + $0xc] sm:$0xf]
    %v165 = vld [vmem:[%s160 + $0x10] sm:$0xf]
    %v166 = vld [vmem:[%s160 + $0x14] sm:$0xf]
    %v167 = vld [vmem:[%s160 + $0x18] sm:$0xf]
    %v168 = vld [vmem:[%s160 + $0x1c] sm:$0xf]
    %v169 = vld [vmem:[%s160 + $0x20] sm:$0xf]
    %v170 = vld [vmem:[%s160 + $0x24] sm:$0xf]
    %v171 = vld [vmem:[%s160 + $0x28] sm:$0xf]
    %v172 = vld [vmem:[%s160 + $0x2c] sm:$0xf]
    %v173 = vld [vmem:[%s160 + $0x30] sm:$0xf]
    %v174 = vld [vmem:[%s160 + $0x34] sm:$0xf]
    %v175 = vld [vmem:[%s160 + $0x38] sm:$0xf]
    %v176 = vld [vmem:[%s160 + $0x3c] sm:$0xf]
    %s177 = scalar_lea.vmem %s2, 1
    %v178 = vld [vmem:[%s177] sm:$0x1]
    %v180 = vlaneseq
    %v181 = vshrl.u32 %v180, 7
    %v182 = vsub.s32 0, %v181
    %v183 = vrot.slane %v178, %v182
    %v201 = vunpack.c.l.b16 %v161
    %v202 = vunpack.c.l.b16 %v162
    %v203 = vunpack.c.l.b16 %v163
    %v204 = vunpack.c.l.b16 %v164
    %v205 = vunpack.c.l.b16 %v165
    %v206 = vunpack.c.l.b16 %v166
    %v207 = vunpack.c.l.b16 %v167
    %v208 = vunpack.c.l.b16 %v168
    %v209 = vunpack.c.l.b16 %v169
    %v210 = vunpack.c.l.b16 %v170
    %v211 = vunpack.c.l.b16 %v171
    %v212 = vunpack.c.l.b16 %v172
    %v213 = vunpack.c.l.b16 %v173
    %v214 = vunpack.c.l.b16 %v174
    %v215 = vunpack.c.l.b16 %v175
    %v216 = vunpack.c.l.b16 %v176
    %v217 = vpack.c.b16 %v202, %v201
    %v218 = vpack.c.b16 %v204, %v203
    %v219 = vpack.c.b16 %v206, %v205
    %v220 = vpack.c.b16 %v208, %v207
    %v221 = vpack.c.b16 %v210, %v209
    %v222 = vpack.c.b16 %v212, %v211
    %v223 = vpack.c.b16 %v214, %v213
    %v224 = vpack.c.b16 %v216, %v215
    %233 = vmatprep.subr.bf16.mxu0 0
    %234 = vmatpush1.bf16.msra.mxu0 %v217
    %235 = vmatprep.subr.bf16.mxu0 0
    %236 = vmatpush1.bf16.msra.mxu0 %v218
    %237 = vmatprep.subr.bf16.mxu0 0
    %238 = vmatpush1.bf16.msra.mxu0 %v219
    %239 = vmatprep.subr.bf16.mxu0 0
    %240 = vmatpush1.bf16.msra.mxu0 %v220
    %241 = vmatprep.subr.bf16.mxu0 0
    %242 = vmatpush1.bf16.msra.mxu0 %v221
    %243 = vmatprep.subr.bf16.mxu0 0
    %244 = vmatpush1.bf16.msra.mxu0 %v222
    %245 = vmatprep.subr.bf16.mxu0 0
    %246 = vmatpush1.bf16.msra.mxu0 %v223
    %247 = vmatprep.subr.bf16.mxu0 0
    %248 = vmatpush1.bf16.msra.mxu0 %v224
    %249 = vmatprep.subr.bf16.mxu0 0
    %250 = vmatpush1.bf16.msra.mxu0 0
    %251 = vmatprep.subr.bf16.mxu0 0
    %252 = vmatpush1.bf16.msra.mxu0 0
    %253 = vmatprep.subr.bf16.mxu0 0
    %254 = vmatpush1.bf16.msra.mxu0 0
    %255 = vmatprep.subr.bf16.mxu0 0
    %256 = vmatpush1.bf16.msra.mxu0 0
    %257 = vmatprep.subr.bf16.mxu0 0
    %258 = vmatpush1.bf16.msra.mxu0 0
    %259 = vmatprep.subr.bf16.mxu0 0
    %260 = vmatpush1.bf16.msra.mxu0 0
    %261 = vmatprep.subr.bf16.mxu0 0
    %262 = vmatpush1.bf16.msra.mxu0 0
    %263 = vmatprep.subr.bf16.mxu0 0
    %264 = vmatpush1.bf16.msra.mxu0 0
    %265 = vmatprep.mubr.bf16.mxu0 0
    %266 = vmatmul.mubr.bf16.gmra.mrb[0].mxu0 %v159
    %v267 = vpop.f32.mrb[0].mxu0
    %v268 = vadd.f32 %v183, %v267
    %v269 = vpop.f32.mrb[0].mxu0
    %v270 = vpop.f32.mrb[0].mxu0
    %v271 = vpop.f32.mrb[0].mxu0
    %272 = vdwg.mxu0
    %v273 = vmax.f32 %v268, 0.0
    %v274 = vld [vmem:[%s3] sm:$0x1]
    %v276 = vlaneseq
    %v277 = vshrl.u32 %v276, 7
    %v278 = vsub.s32 0, %v277
    %v279 = vrot.slane %v274, %v278
    %v281 = vmul.f32 %v273, %v279
    %v282 = vld [vmem:[%s4] sm:$0xff]
    %v283 = vld [vmem:[%s4 + $0x8] sm:$0xff]
    %v284 = vld [vmem:[%s4 + $0x10] sm:$0xff]
    %v285 = vld [vmem:[%s4 + $0x18] sm:$0xff]
    %v286 = vld [vmem:[%s4 + $0x20] sm:$0xff]
    %v287 = vld [vmem:[%s4 + $0x28] sm:$0xff]
    %v288 = vld [vmem:[%s4 + $0x30] sm:$0xff]
    %v289 = vld [vmem:[%s4 + $0x38] sm:$0xff]
    %v290 = vld [vmem:[%s4 + $0x40] sm:$0xff]
    %v291 = vld [vmem:[%s4 + $0x48] sm:$0xff]
    %v292 = vld [vmem:[%s4 + $0x50] sm:$0xff]
    %v293 = vld [vmem:[%s4 + $0x58] sm:$0xff]
    %v294 = vld [vmem:[%s4 + $0x60] sm:$0xff]
    %v295 = vld [vmem:[%s4 + $0x68] sm:$0xff]
    %v296 = vld [vmem:[%s4 + $0x70] sm:$0xff]
    %v297 = vld [vmem:[%s4 + $0x78] sm:$0xff]
    %v298 = vld [vmem:[%s5] sm:$0x1]
    %v300 = vlaneseq
    %v301 = vshrl.u32 %v300, 7
    %v302 = vsub.s32 0, %v301
    %v303 = vrot.slane %v298, %v302
    %305 = vmatprep.subr.mxu0 0.0
    %306 = vmatpush1.msra.mxu0 %v282
    %307 = vmatprep.subr.mxu0 0.0
    %308 = vmatpush1.msra.mxu0 %v283
    %309 = vmatprep.subr.mxu0 0.0
    %310 = vmatpush1.msra.mxu0 %v284
    %311 = vmatprep.subr.mxu0 0.0
    %312 = vmatpush1.msra.mxu0 %v285
    %313 = vmatprep.subr.mxu0 0.0
    %314 = vmatpush1.msra.mxu0 %v286
    %315 = vmatprep.subr.mxu0 0.0
    %316 = vmatpush1.msra.mxu0 %v287
    %317 = vmatprep.subr.mxu0 0.0
    %318 = vmatpush1.msra.mxu0 %v288
    %319 = vmatprep.subr.mxu0 0.0
    %320 = vmatpush1.msra.mxu0 %v289
    %321 = vmatprep.subr.mxu0 0.0
    %322 = vmatpush1.msra.mxu0 %v290
    %323 = vmatprep.subr.mxu0 0.0
    %324 = vmatpush1.msra.mxu0 %v291
    %325 = vmatprep.subr.mxu0 0.0
    %326 = vmatpush1.msra.mxu0 %v292
    %327 = vmatprep.subr.mxu0 0.0
    %328 = vmatpush1.msra.mxu0 %v293
    %329 = vmatprep.subr.mxu0 0.0
    %330 = vmatpush1.msra.mxu0 %v294
    %331 = vmatprep.subr.mxu0 0.0
    %332 = vmatpush1.msra.mxu0 %v295
    %333 = vmatprep.subr.mxu0 0.0
    %334 = vmatpush1.msra.mxu0 %v296
    %335 = vmatprep.subr.mxu0 0.0
    %336 = vmatpush1.msra.mxu0 %v297
    %337 = vmatprep.subr.mxu0 0.0
    %338 = vmatpush1.msra.mxu0 0.0
    %339 = vmatprep.subr.mxu0 0.0
    %340 = vmatpush1.msra.mxu0 0.0
    %341 = vmatprep.subr.mxu0 0.0
    %342 = vmatpush1.msra.mxu0 0.0
    %343 = vmatprep.subr.mxu0 0.0
    %344 = vmatpush1.msra.mxu0 0.0
    %345 = vmatprep.subr.mxu0 0.0
    %346 = vmatpush1.msra.mxu0 0.0
    %347 = vmatprep.subr.mxu0 0.0
    %348 = vmatpush1.msra.mxu0 0.0
    %349 = vmatprep.subr.mxu0 0.0
    %350 = vmatpush1.msra.mxu0 0.0
    %351 = vmatprep.subr.mxu0 0.0
    %352 = vmatpush1.msra.mxu0 0.0
    %353 = vmatprep.subr.mxu0 0.0
    %354 = vmatpush1.msra.mxu0 0.0
    %355 = vmatprep.subr.mxu0 0.0
    %356 = vmatpush1.msra.mxu0 0.0
    %357 = vmatprep.subr.mxu0 0.0
    %358 = vmatpush1.msra.mxu0 0.0
    %359 = vmatprep.subr.mxu0 0.0
    %360 = vmatpush1.msra.mxu0 0.0
    %361 = vmatprep.subr.mxu0 0.0
    %362 = vmatpush1.msra.mxu0 0.0
    %363 = vmatprep.subr.mxu0 0.0
    %364 = vmatpush1.msra.mxu0 0.0
    %365 = vmatprep.subr.mxu0 0.0
    %366 = vmatpush1.msra.mxu0 0.0
    %367 = vmatprep.subr.mxu0 0.0
    %368 = vmatpush1.msra.mxu0 0.0
    %369 = vmatprep.mubr.f32.mxu0 0.0
    %370 = vmatmul.mubr.f32.gmra.mrb[0].mxu0 %v281
    %v371 = vpop.f32.mrb[0].mxu0
    %v372 = vadd.f32 %v303, %v371
    %v373 = vpop.f32.mrb[0].mxu0
    %374 = vdwg.mxu0
    %vm375 = vcmask 130048
    %v376 = vsel %vm375, %v372, -inf
    %377 = vmax.xlane.f32.xlu0 %v376
    %v378 = vpop.xlane.xlu0 %377
    %v379 = vsub.f32 %v372, %v378
    %v380 = vmul.f32 %v379, 1.442695
    %v381 = vpow.pop %v380
    %v382 = vld [vmem:[%s6] sm:$0xff]
    %v383 = vld [vmem:[%s6 + $0x8] sm:$0xff]
    %v385 = vsel %vm375, %v381, 0
    %387 = vmatprep.subr.mxu0 0.0
    %388 = vmatpush1.msra.mxu0 %v382
    %389 = vmatprep.subr.mxu0 0.0
    %390 = vmatpush1.msra.mxu0 %v383
    %391 = vmatprep.subr.mxu0 0.0
    %392 = vmatpush1.msra.mxu0 0.0
    %393 = vmatprep.subr.mxu0 0.0
    %394 = vmatpush1.msra.mxu0 0.0
    %395 = vmatprep.subr.mxu0 0.0
    %396 = vmatpush1.msra.mxu0 0.0
    %397 = vmatprep.subr.mxu0 0.0
    %398 = vmatpush1.msra.mxu0 0.0
    %399 = vmatprep.subr.mxu0 0.0
    %400 = vmatpush1.msra.mxu0 0.0
    %401 = vmatprep.subr.mxu0 0.0
    %402 = vmatpush1.msra.mxu0 0.0
    %403 = vmatprep.subr.mxu0 0.0
    %404 = vmatpush1.msra.mxu0 0.0
    %405 = vmatprep.subr.mxu0 0.0
    %406 = vmatpush1.msra.mxu0 0.0
    %407 = vmatprep.subr.mxu0 0.0
    %408 = vmatpush1.msra.mxu0 0.0
    %409 = vmatprep.subr.mxu0 0.0
    %410 = vmatpush1.msra.mxu0 0.0
    %411 = vmatprep.subr.mxu0 0.0
    %412 = vmatpush1.msra.mxu0 0.0
    %413 = vmatprep.subr.mxu0 0.0
    %414 = vmatpush1.msra.mxu0 0.0
    %415 = vmatprep.subr.mxu0 0.0
    %416 = vmatpush1.msra.mxu0 0.0
    %417 = vmatprep.subr.mxu0 0.0
    %418 = vmatpush1.msra.mxu0 0.0
    %419 = vmatprep.subr.mxu0 0.0
    %420 = vmatpush1.msra.mxu0 0.0
    %421 = vmatprep.subr.mxu0 0.0
    %422 = vmatpush1.msra.mxu0 0.0
    %423 = vmatprep.subr.mxu0 0.0
    %424 = vmatpush1.msra.mxu0 0.0
    %425 = vmatprep.subr.mxu0 0.0
    %426 = vmatpush1.msra.mxu0 0.0
    %427 = vmatprep.subr.mxu0 0.0
    %428 = vmatpush1.msra.mxu0 0.0
    %429 = vmatprep.subr.mxu0 0.0
    %430 = vmatpush1.msra.mxu0 0.0
    %431 = vmatprep.subr.mxu0 0.0
    %432 = vmatpush1.msra.mxu0 0.0
    %433 = vmatprep.subr.mxu0 0.0
    %434 = vmatpush1.msra.mxu0 0.0
    %435 = vmatprep.subr.mxu0 0.0
    %436 = vmatpush1.msra.mxu0 0.0
    %437 = vmatprep.subr.mxu0 0.0
    %438 = vmatpush1.msra.mxu0 0.0
    %439 = vmatprep.subr.mxu0 0.0
    %440 = vmatpush1.msra.mxu0 0.0
    %441 = vmatprep.subr.mxu0 0.0
    %442 = vmatpush1.msra.mxu0 0.0
    %443 = vmatprep.subr.mxu0 0.0
    %444 = vmatpush1.msra.mxu0 0.0
    %445 = vmatprep.subr.mxu0 0.0
    %446 = vmatpush1.msra.mxu0 0.0
    %447 = vmatprep.subr.mxu0 0.0
    %448 = vmatpush1.msra.mxu0 0.0
    %449 = vmatprep.subr.mxu0 0.0
    %450 = vmatpush1.msra.mxu0 0.0
    %451 = vmatprep.mubr.f32.mxu0 0.0
    %452 = vmatmul.mubr.f32.gmra.mrb[0].mxu0 %v385
    %v453 = vpop.f32.mrb[0].mxu0
    %v454 = vadd.f32 0.0, %v453
    %v455 = vpop.f32.mrb[0].mxu0
    %456 = vdwg.mxu0
    %v457 = vrcp.pop %v454
    %v458 = vmul.f32 %v381, %v457
    %v459 = vld [vmem:[#allocation2] sm:$0xff]
    %v460 = vld [vmem:[#allocation2 + $0x8] sm:$0xff]
    %v461 = vld [vmem:[#allocation2 + $0x10] sm:$0xff]
    %v462 = vld [vmem:[#allocation2 + $0x18] sm:$0xff]
    %v463 = vld [vmem:[#allocation2 + $0x20] sm:$0xff]
    %v464 = vld [vmem:[#allocation2 + $0x28] sm:$0xff]
    %v465 = vld [vmem:[#allocation2 + $0x30] sm:$0xff]
    %v466 = vld [vmem:[#allocation2 + $0x38] sm:$0xff]
    %v468 = vsel %vm375, %v458, 0
    %470 = vmatprep.subr.mxu0 %v460
    %471 = vmatpush1.msra.mxu0 %v459
    %472 = vmatprep.subr.mxu0 %v464
    %473 = vmatpush1.msra.mxu0 %v463
    %474 = vmatprep.subr.mxu0 0.0
    %475 = vmatpush1.msra.mxu0 0.0
    %476 = vmatprep.subr.mxu0 0.0
    %477 = vmatpush1.msra.mxu0 0.0
    %478 = vmatprep.subr.mxu0 0.0
    %479 = vmatpush1.msra.mxu0 0.0
    %480 = vmatprep.subr.mxu0 0.0
    %481 = vmatpush1.msra.mxu0 0.0
    %482 = vmatprep.subr.mxu0 0.0
    %483 = vmatpush1.msra.mxu0 0.0
    %484 = vmatprep.subr.mxu0 0.0
    %485 = vmatpush1.msra.mxu0 0.0
    %486 = vmatprep.subr.mxu0 0.0
    %487 = vmatpush1.msra.mxu0 0.0
    %488 = vmatprep.subr.mxu0 0.0
    %489 = vmatpush1.msra.mxu0 0.0
    %490 = vmatprep.subr.mxu0 0.0
    %491 = vmatpush1.msra.mxu0 0.0
    %492 = vmatprep.subr.mxu0 0.0
    %493 = vmatpush1.msra.mxu0 0.0
    %494 = vmatprep.subr.mxu0 0.0
    %495 = vmatpush1.msra.mxu0 0.0
    %496 = vmatprep.subr.mxu0 0.0
    %497 = vmatpush1.msra.mxu0 0.0
    %498 = vmatprep.subr.mxu0 0.0
    %499 = vmatpush1.msra.mxu0 0.0
    %500 = vmatprep.subr.mxu0 0.0
    %501 = vmatpush1.msra.mxu0 0.0
    %502 = vmatprep.subr.mxu0 0.0
    %503 = vmatpush1.msra.mxu0 0.0
    %504 = vmatprep.subr.mxu0 0.0
    %505 = vmatpush1.msra.mxu0 0.0
    %506 = vmatprep.subr.mxu0 0.0
    %507 = vmatpush1.msra.mxu0 0.0
    %508 = vmatprep.subr.mxu0 0.0
    %509 = vmatpush1.msra.mxu0 0.0
    %510 = vmatprep.subr.mxu0 0.0
    %511 = vmatpush1.msra.mxu0 0.0
    %512 = vmatprep.subr.mxu0 0.0
    %513 = vmatpush1.msra.mxu0 0.0
    %514 = vmatprep.subr.mxu0 0.0
    %515 = vmatpush1.msra.mxu0 0.0
    %516 = vmatprep.subr.mxu0 0.0
    %517 = vmatpush1.msra.mxu0 0.0
    %518 = vmatprep.subr.mxu0 0.0
    %519 = vmatpush1.msra.mxu0 0.0
    %520 = vmatprep.subr.mxu0 0.0
    %521 = vmatpush1.msra.mxu0 0.0
    %522 = vmatprep.subr.mxu0 0.0
    %523 = vmatpush1.msra.mxu0 0.0
    %524 = vmatprep.subr.mxu0 0.0
    %525 = vmatpush1.msra.mxu0 0.0
    %526 = vmatprep.subr.mxu0 0.0
    %527 = vmatpush1.msra.mxu0 0.0
    %528 = vmatprep.subr.mxu0 0.0
    %529 = vmatpush1.msra.mxu0 0.0
    %530 = vmatprep.subr.mxu0 0.0
    %531 = vmatpush1.msra.mxu0 0.0
    %532 = vmatprep.subr.mxu0 0.0
    %533 = vmatpush1.msra.mxu0 0.0
    %534 = vmatprep.mubr.f32.mxu0 0.0
    %535 = vmatmul.mubr.f32.gmra.mrb[0].mxu0 %v468
    %v536 = vpop.f32.mrb[0].mxu0
    %v537 = vadd.f32 0.0, %v536
    %v538 = vpop.f32.mrb[0].mxu0
    %v539 = vadd.f32 0.0, %v538
    %540 = vdwg.mxu0
    %541 = vmatprep.subr.mxu0 %v462
    %542 = vmatpush1.msra.mxu0 %v461
    %543 = vmatprep.subr.mxu0 %v466
    %544 = vmatpush1.msra.mxu0 %v465
    %545 = vmatprep.subr.mxu0 0.0
    %546 = vmatpush1.msra.mxu0 0.0
    %547 = vmatprep.subr.mxu0 0.0
    %548 = vmatpush1.msra.mxu0 0.0
    %549 = vmatprep.subr.mxu0 0.0
    %550 = vmatpush1.msra.mxu0 0.0
    %551 = vmatprep.subr.mxu0 0.0
    %552 = vmatpush1.msra.mxu0 0.0
    %553 = vmatprep.subr.mxu0 0.0
    %554 = vmatpush1.msra.mxu0 0.0
    %555 = vmatprep.subr.mxu0 0.0
    %556 = vmatpush1.msra.mxu0 0.0
    %557 = vmatprep.subr.mxu0 0.0
    %558 = vmatpush1.msra.mxu0 0.0
    %559 = vmatprep.subr.mxu0 0.0
    %560 = vmatpush1.msra.mxu0 0.0
    %561 = vmatprep.subr.mxu0 0.0
    %562 = vmatpush1.msra.mxu0 0.0
    %563 = vmatprep.subr.mxu0 0.0
    %564 = vmatpush1.msra.mxu0 0.0
    %565 = vmatprep.subr.mxu0 0.0
    %566 = vmatpush1.msra.mxu0 0.0
    %567 = vmatprep.subr.mxu0 0.0
    %568 = vmatpush1.msra.mxu0 0.0
    %569 = vmatprep.subr.mxu0 0.0
    %570 = vmatpush1.msra.mxu0 0.0
    %571 = vmatprep.subr.mxu0 0.0
    %572 = vmatpush1.msra.mxu0 0.0
    %573 = vmatprep.subr.mxu0 0.0
    %574 = vmatpush1.msra.mxu0 0.0
    %575 = vmatprep.subr.mxu0 0.0
    %576 = vmatpush1.msra.mxu0 0.0
    %577 = vmatprep.subr.mxu0 0.0
    %578 = vmatpush1.msra.mxu0 0.0
    %579 = vmatprep.subr.mxu0 0.0
    %580 = vmatpush1.msra.mxu0 0.0
    %581 = vmatprep.subr.mxu0 0.0
    %582 = vmatpush1.msra.mxu0 0.0
    %583 = vmatprep.subr.mxu0 0.0
    %584 = vmatpush1.msra.mxu0 0.0
    %585 = vmatprep.subr.mxu0 0.0
    %586 = vmatpush1.msra.mxu0 0.0
    %587 = vmatprep.subr.mxu0 0.0
    %588 = vmatpush1.msra.mxu0 0.0
    %589 = vmatprep.subr.mxu0 0.0
    %590 = vmatpush1.msra.mxu0 0.0
    %591 = vmatprep.subr.mxu0 0.0
    %592 = vmatpush1.msra.mxu0 0.0
    %593 = vmatprep.subr.mxu0 0.0
    %594 = vmatpush1.msra.mxu0 0.0
    %595 = vmatprep.subr.mxu0 0.0
    %596 = vmatpush1.msra.mxu0 0.0
    %597 = vmatprep.subr.mxu0 0.0
    %598 = vmatpush1.msra.mxu0 0.0
    %599 = vmatprep.subr.mxu0 0.0
    %600 = vmatpush1.msra.mxu0 0.0
    %601 = vmatprep.subr.mxu0 0.0
    %602 = vmatpush1.msra.mxu0 0.0
    %603 = vmatprep.subr.mxu0 0.0
    %604 = vmatpush1.msra.mxu0 0.0
    %605 = vmatprep.mubr.f32.mxu0 0.0
    %606 = vmatmul.mubr.f32.gmra.mrb[0].mxu0 %v468
    %v607 = vpop.f32.mrb[0].mxu0
    %v608 = vadd.f32 0.0, %v607
    %v609 = vpop.f32.mrb[0].mxu0
    %v610 = vadd.f32 0.0, %v609
    %611 = vdwg.mxu0
    %v612 = vmul.f32 %v537, %v281
    %613 = vrot.lane.b32.xlu0 %v281, 32
    %v614 = vpop.permute.xlu0 %613
    %v615 = vmul.f32 %v539, %v614
    %v616 = vadd.f32 %v612, %v615
    %617 = vrot.lane.b32.xlu0 %v281, 64
    %v618 = vpop.permute.xlu0 %617
    %v619 = vmul.f32 %v608, %v618
    %v620 = vadd.f32 %v616, %v619
    %621 = vrot.lane.b32.xlu0 %v281, 96
    %v622 = vpop.permute.xlu0 %621
    %v623 = vmul.f32 %v610, %v622
    %v624 = vadd.f32 %v620, %v623
    %v625 = vadd.f32 %v624, %v281
    %v626 = vpack.c.bf16 %v625, %v625
    %s627 = scalar_lea.vmem %s1, 128
    %v628 = vld [vmem:[%s627] sm:$0xf]
    %v629 = vld [vmem:[%s627 + $0x4] sm:$0xf]
    %v630 = vld [vmem:[%s627 + $0x8] sm:$0xf]
    %v631 = vld [vmem:[%s627 + $0xc] sm:$0xf]
    %v632 = vld [vmem:[%s627 + $0x10] sm:$0xf]
    %v633 = vld [vmem:[%s627 + $0x14] sm:$0xf]
    %v634 = vld [vmem:[%s627 + $0x18] sm:$0xf]
    %v635 = vld [vmem:[%s627 + $0x1c] sm:$0xf]
    %v636 = vld [vmem:[%s627 + $0x20] sm:$0xf]
    %v637 = vld [vmem:[%s627 + $0x24] sm:$0xf]
    %v638 = vld [vmem:[%s627 + $0x28] sm:$0xf]
    %v639 = vld [vmem:[%s627 + $0x2c] sm:$0xf]
    %v640 = vld [vmem:[%s627 + $0x30] sm:$0xf]
    %v641 = vld [vmem:[%s627 + $0x34] sm:$0xf]
    %v642 = vld [vmem:[%s627 + $0x38] sm:$0xf]
    %v643 = vld [vmem:[%s627 + $0x3c] sm:$0xf]
    %s644 = scalar_lea.vmem %s2, 2
    %v645 = vld [vmem:[%s644] sm:$0x1]
    %v647 = vlaneseq
    %v648 = vshrl.u32 %v647, 7
    %v649 = vsub.s32 0, %v648
    %v650 = vrot.slane %v645, %v649
    %v668 = vunpack.c.l.b16 %v628
    %v669 = vunpack.c.l.b16 %v629
    %v670 = vunpack.c.l.b16 %v630
    %v671 = vunpack.c.l.b16 %v631
    %v672 = vunpack.c.l.b16 %v632
    %v673 = vunpack.c.l.b16 %v633
    %v674 = vunpack.c.l.b16 %v634
    %v675 = vunpack.c.l.b16 %v635
    %v676 = vunpack.c.l.b16 %v636
    %v677 = vunpack.c.l.b16 %v637
    %v678 = vunpack.c.l.b16 %v638
    %v679 = vunpack.c.l.b16 %v639
    %v680 = vunpack.c.l.b16 %v640
    %v681 = vunpack.c.l.b16 %v641
    %v682 = vunpack.c.l.b16 %v642
    %v683 = vunpack.c.l.b16 %v643
    %v684 = vpack.c.b16 %v669, %v668
    %v685 = vpack.c.b16 %v671, %v670
    %v686 = vpack.c.b16 %v673, %v672
    %v687 = vpack.c.b16 %v675, %v674
    %v688 = vpack.c.b16 %v677, %v676
    %v689 = vpack.c.b16 %v679, %v678
    %v690 = vpack.c.b16 %v681, %v680
    %v691 = vpack.c.b16 %v683, %v682
    %700 = vmatprep.subr.bf16.mxu0 0
    %701 = vmatpush1.bf16.msra.mxu0 %v684
    %702 = vmatprep.subr.bf16.mxu0 0
    %703 = vmatpush1.bf16.msra.mxu0 %v685
    %704 = vmatprep.subr.bf16.mxu0 0
    %705 = vmatpush1.bf16.msra.mxu0 %v686
    %706 = vmatprep.subr.bf16.mxu0 0
    %707 = vmatpush1.bf16.msra.mxu0 %v687
    %708 = vmatprep.subr.bf16.mxu0 0
    %709 = vmatpush1.bf16.msra.mxu0 %v688
    %710 = vmatprep.subr.bf16.mxu0 0
    %711 = vmatpush1.bf16.msra.mxu0 %v689
    %712 = vmatprep.subr.bf16.mxu0 0
    %713 = vmatpush1.bf16.msra.mxu0 %v690
    %714 = vmatprep.subr.bf16.mxu0 0
    %715 = vmatpush1.bf16.msra.mxu0 %v691
    %716 = vmatprep.subr.bf16.mxu0 0
    %717 = vmatpush1.bf16.msra.mxu0 0
    %718 = vmatprep.subr.bf16.mxu0 0
    %719 = vmatpush1.bf16.msra.mxu0 0
    %720 = vmatprep.subr.bf16.mxu0 0
    %721 = vmatpush1.bf16.msra.mxu0 0
    %722 = vmatprep.subr.bf16.mxu0 0
    %723 = vmatpush1.bf16.msra.mxu0 0
    %724 = vmatprep.subr.bf16.mxu0 0
    %725 = vmatpush1.bf16.msra.mxu0 0
    %726 = vmatprep.subr.bf16.mxu0 0
    %727 = vmatpush1.bf16.msra.mxu0 0
    %728 = vmatprep.subr.bf16.mxu0 0
    %729 = vmatpush1.bf16.msra.mxu0 0
    %730 = vmatprep.subr.bf16.mxu0 0
    %731 = vmatpush1.bf16.msra.mxu0 0
    %732 = vmatprep.mubr.bf16.mxu0 0
    %733 = vmatmul.mubr.bf16.gmra.mrb[0].mxu0 %v626
    %v734 = vpop.f32.mrb[0].mxu0
    %v735 = vadd.f32 %v650, %v734
    %v736 = vpop.f32.mrb[0].mxu0
    %v737 = vpop.f32.mrb[0].mxu0
    %v738 = vpop.f32.mrb[0].mxu0
    %739 = vdwg.mxu0
    %v740 = vmax.f32 %v735, 0.0
    %v741 = vpack.c.bf16 %v740, %v740
    %s742 = scalar_lea.vmem %s1, 192
    %v743 = vld [vmem:[%s742] sm:$0xf]
    %v744 = vld [vmem:[%s742 + $0x4] sm:$0xf]
    %v745 = vld [vmem:[%s742 + $0x8] sm:$0xf]
    %v746 = vld [vmem:[%s742 + $0xc] sm:$0xf]
    %v747 = vld [vmem:[%s742 + $0x10] sm:$0xf]
    %v748 = vld [vmem:[%s742 + $0x14] sm:$0xf]
    %v749 = vld [vmem:[%s742 + $0x18] sm:$0xf]
    %v750 = vld [vmem:[%s742 + $0x1c] sm:$0xf]
    %v751 = vld [vmem:[%s742 + $0x20] sm:$0xf]
    %v752 = vld [vmem:[%s742 + $0x24] sm:$0xf]
    %v753 = vld [vmem:[%s742 + $0x28] sm:$0xf]
    %v754 = vld [vmem:[%s742 + $0x2c] sm:$0xf]
    %v755 = vld [vmem:[%s742 + $0x30] sm:$0xf]
    %v756 = vld [vmem:[%s742 + $0x34] sm:$0xf]
    %v757 = vld [vmem:[%s742 + $0x38] sm:$0xf]
    %v758 = vld [vmem:[%s742 + $0x3c] sm:$0xf]
    %s759 = scalar_lea.vmem %s2, 3
    %v760 = vld [vmem:[%s759] sm:$0x1]
    %v762 = vlaneseq
    %v763 = vshrl.u32 %v762, 7
    %v764 = vsub.s32 0, %v763
    %v765 = vrot.slane %v760, %v764
    %v783 = vunpack.c.l.b16 %v743
    %v784 = vunpack.c.l.b16 %v744
    %v785 = vunpack.c.l.b16 %v745
    %v786 = vunpack.c.l.b16 %v746
    %v787 = vunpack.c.l.b16 %v747
    %v788 = vunpack.c.l.b16 %v748
    %v789 = vunpack.c.l.b16 %v749
    %v790 = vunpack.c.l.b16 %v750
    %v791 = vunpack.c.l.b16 %v751
    %v792 = vunpack.c.l.b16 %v752
    %v793 = vunpack.c.l.b16 %v753
    %v794 = vunpack.c.l.b16 %v754
    %v795 = vunpack.c.l.b16 %v755
    %v796 = vunpack.c.l.b16 %v756
    %v797 = vunpack.c.l.b16 %v757
    %v798 = vunpack.c.l.b16 %v758
    %v799 = vpack.c.b16 %v784, %v783
    %v800 = vpack.c.b16 %v786, %v785
    %v801 = vpack.c.b16 %v788, %v787
    %v802 = vpack.c.b16 %v790, %v789
    %v803 = vpack.c.b16 %v792, %v791
    %v804 = vpack.c.b16 %v794, %v793
    %v805 = vpack.c.b16 %v796, %v795
    %v806 = vpack.c.b16 %v798, %v797
    %815 = vmatprep.subr.bf16.mxu0 0
    %816 = vmatpush1.bf16.msra.mxu0 %v799
    %817 = vmatprep.subr.bf16.mxu0 0
    %818 = vmatpush1.bf16.msra.mxu0 %v800
    %819 = vmatprep.subr.bf16.mxu0 0
    %820 = vmatpush1.bf16.msra.mxu0 %v801
    %821 = vmatprep.subr.bf16.mxu0 0
    %822 = vmatpush1.bf16.msra.mxu0 %v802
    %823 = vmatprep.subr.bf16.mxu0 0
    %824 = vmatpush1.bf16.msra.mxu0 %v803
    %825 = vmatprep.subr.bf16.mxu0 0
    %826 = vmatpush1.bf16.msra.mxu0 %v804
    %827 = vmatprep.subr.bf16.mxu0 0
    %828 = vmatpush1.bf16.msra.mxu0 %v805
    %829 = vmatprep.subr.bf16.mxu0 0
    %830 = vmatpush1.bf16.msra.mxu0 %v806
    %831 = vmatprep.subr.bf16.mxu0 0
    %832 = vmatpush1.bf16.msra.mxu0 0
    %833 = vmatprep.subr.bf16.mxu0 0
    %834 = vmatpush1.bf16.msra.mxu0 0
    %835 = vmatprep.subr.bf16.mxu0 0
    %836 = vmatpush1.bf16.msra.mxu0 0
    %837 = vmatprep.subr.bf16.mxu0 0
    %838 = vmatpush1.bf16.msra.mxu0 0
    %839 = vmatprep.subr.bf16.mxu0 0
    %840 = vmatpush1.bf16.msra.mxu0 0
    %841 = vmatprep.subr.bf16.mxu0 0
    %842 = vmatpush1.bf16.msra.mxu0 0
    %843 = vmatprep.subr.bf16.mxu0 0
    %844 = vmatpush1.bf16.msra.mxu0 0
    %845 = vmatprep.subr.bf16.mxu0 0
    %846 = vmatpush1.bf16.msra.mxu0 0
    %847 = vmatprep.mubr.bf16.mxu0 0
    %848 = vmatmul.mubr.bf16.gmra.mrb[0].mxu0 %v741
    %v849 = vpop.f32.mrb[0].mxu0
    %v850 = vadd.f32 %v765, %v849
    %v851 = vpop.f32.mrb[0].mxu0
    %v852 = vpop.f32.mrb[0].mxu0
    %v853 = vpop.f32.mrb[0].mxu0
    %854 = vdwg.mxu0
    %v855 = vmax.f32 %v850, 0.0
    %s856 = scalar_lea.vmem %s3, 1
    %v857 = vld [vmem:[%s856] sm:$0x1]
    %v859 = vlaneseq
    %v860 = vshrl.u32 %v859, 7
    %v861 = vsub.s32 0, %v860
    %v862 = vrot.slane %v857, %v861
    %v864 = vmul.f32 %v855, %v862
    %s865 = scalar_lea.vmem %s4, 128
    %v866 = vld [vmem:[%s865] sm:$0xff]
    %v867 = vld [vmem:[%s865 + $0x8] sm:$0xff]
    %v868 = vld [vmem:[%s865 + $0x10] sm:$0xff]
    %v869 = vld [vmem:[%s865 + $0x18] sm:$0xff]
    %v870 = vld [vmem:[%s865 + $0x20] sm:$0xff]
    %v871 = vld [vmem:[%s865 + $0x28] sm:$0xff]
    %v872 = vld [vmem:[%s865 + $0x30] sm:$0xff]
    %v873 = vld [vmem:[%s865 + $0x38] sm:$0xff]
    %v874 = vld [vmem:[%s865 + $0x40] sm:$0xff]
    %v875 = vld [vmem:[%s865 + $0x48] sm:$0xff]
    %v876 = vld [vmem:[%s865 + $0x50] sm:$0xff]
    %v877 = vld [vmem:[%s865 + $0x58] sm:$0xff]
    %v878 = vld [vmem:[%s865 + $0x60] sm:$0xff]
    %v879 = vld [vmem:[%s865 + $0x68] sm:$0xff]
    %v880 = vld [vmem:[%s865 + $0x70] sm:$0xff]
    %v881 = vld [vmem:[%s865 + $0x78] sm:$0xff]
    %s882 = scalar_lea.vmem %s5, 1
    %v883 = vld [vmem:[%s882] sm:$0x1]
    %v885 = vlaneseq
    %v886 = vshrl.u32 %v885, 7
    %v887 = vsub.s32 0, %v886
    %v888 = vrot.slane %v883, %v887
    %890 = vmatprep.subr.mxu0 0.0
    %891 = vmatpush1.msra.mxu0 %v866
    %892 = vmatprep.subr.mxu0 0.0
    %893 = vmatpush1.msra.mxu0 %v867
    %894 = vmatprep.subr.mxu0 0.0
    %895 = vmatpush1.msra.mxu0 %v868
    %896 = vmatprep.subr.mxu0 0.0
    %897 = vmatpush1.msra.mxu0 %v869
    %898 = vmatprep.subr.mxu0 0.0
    %899 = vmatpush1.msra.mxu0 %v870
    %900 = vmatprep.subr.mxu0 0.0
    %901 = vmatpush1.msra.mxu0 %v871
    %902 = vmatprep.subr.mxu0 0.0
    %903 = vmatpush1.msra.mxu0 %v872
    %904 = vmatprep.subr.mxu0 0.0
    %905 = vmatpush1.msra.mxu0 %v873
    %906 = vmatprep.subr.mxu0 0.0
    %907 = vmatpush1.msra.mxu0 %v874
    %908 = vmatprep.subr.mxu0 0.0
    %909 = vmatpush1.msra.mxu0 %v875
    %910 = vmatprep.subr.mxu0 0.0
    %911 = vmatpush1.msra.mxu0 %v876
    %912 = vmatprep.subr.mxu0 0.0
    %913 = vmatpush1.msra.mxu0 %v877
    %914 = vmatprep.subr.mxu0 0.0
    %915 = vmatpush1.msra.mxu0 %v878
    %916 = vmatprep.subr.mxu0 0.0
    %917 = vmatpush1.msra.mxu0 %v879
    %918 = vmatprep.subr.mxu0 0.0
    %919 = vmatpush1.msra.mxu0 %v880
    %920 = vmatprep.subr.mxu0 0.0
    %921 = vmatpush1.msra.mxu0 %v881
    %922 = vmatprep.subr.mxu0 0.0
    %923 = vmatpush1.msra.mxu0 0.0
    %924 = vmatprep.subr.mxu0 0.0
    %925 = vmatpush1.msra.mxu0 0.0
    %926 = vmatprep.subr.mxu0 0.0
    %927 = vmatpush1.msra.mxu0 0.0
    %928 = vmatprep.subr.mxu0 0.0
    %929 = vmatpush1.msra.mxu0 0.0
    %930 = vmatprep.subr.mxu0 0.0
    %931 = vmatpush1.msra.mxu0 0.0
    %932 = vmatprep.subr.mxu0 0.0
    %933 = vmatpush1.msra.mxu0 0.0
    %934 = vmatprep.subr.mxu0 0.0
    %935 = vmatpush1.msra.mxu0 0.0
    %936 = vmatprep.subr.mxu0 0.0
    %937 = vmatpush1.msra.mxu0 0.0
    %938 = vmatprep.subr.mxu0 0.0
    %939 = vmatpush1.msra.mxu0 0.0
    %940 = vmatprep.subr.mxu0 0.0
    %941 = vmatpush1.msra.mxu0 0.0
    %942 = vmatprep.subr.mxu0 0.0
    %943 = vmatpush1.msra.mxu0 0.0
    %944 = vmatprep.subr.mxu0 0.0
    %945 = vmatpush1.msra.mxu0 0.0
    %946 = vmatprep.subr.mxu0 0.0
    %947 = vmatpush1.msra.mxu0 0.0
    %948 = vmatprep.subr.mxu0 0.0
    %949 = vmatpush1.msra.mxu0 0.0
    %950 = vmatprep.subr.mxu0 0.0
    %951 = vmatpush1.msra.mxu0 0.0
    %952 = vmatprep.subr.mxu0 0.0
    %953 = vmatpush1.msra.mxu0 0.0
    %954 = vmatprep.mubr.f32.mxu0 0.0
    %955 = vmatmul.mubr.f32.gmra.mrb[0].mxu0 %v864
    %v956 = vpop.f32.mrb[0].mxu0
    %v957 = vadd.f32 %v888, %v956
    %v958 = vpop.f32.mrb[0].mxu0
    %959 = vdwg.mxu0
    %v960 = vsel %vm375, %v957, -inf
    %961 = vmax.xlane.f32.xlu0 %v960
    %v962 = vpop.xlane.xlu0 %961
    %v963 = vsub.f32 %v957, %v962
    %v964 = vmul.f32 %v963, 1.442695
    %v965 = vpow.pop %v964
    %v967 = vsel %vm375, %v965, 0
    %969 = vmatprep.subr.mxu0 0.0
    %970 = vmatpush1.msra.mxu0 %v382
    %971 = vmatprep.subr.mxu0 0.0
    %972 = vmatpush1.msra.mxu0 %v383
    %973 = vmatprep.subr.mxu0 0.0
    %974 = vmatpush1.msra.mxu0 0.0
    %975 = vmatprep.subr.mxu0 0.0
    %976 = vmatpush1.msra.mxu0 0.0
    %977 = vmatprep.subr.mxu0 0.0
    %978 = vmatpush1.msra.mxu0 0.0
    %979 = vmatprep.subr.mxu0 0.0
    %980 = vmatpush1.msra.mxu0 0.0
    %981 = vmatprep.subr.mxu0 0.0
    %982 = vmatpush1.msra.mxu0 0.0
    %983 = vmatprep.subr.mxu0 0.0
    %984 = vmatpush1.msra.mxu0 0.0
    %985 = vmatprep.subr.mxu0 0.0
    %986 = vmatpush1.msra.mxu0 0.0
    %987 = vmatprep.subr.mxu0 0.0
    %988 = vmatpush1.msra.mxu0 0.0
    %989 = vmatprep.subr.mxu0 0.0
    %990 = vmatpush1.msra.mxu0 0.0
    %991 = vmatprep.subr.mxu0 0.0
    %992 = vmatpush1.msra.mxu0 0.0
    %993 = vmatprep.subr.mxu0 0.0
    %994 = vmatpush1.msra.mxu0 0.0
    %995 = vmatprep.subr.mxu0 0.0
    %996 = vmatpush1.msra.mxu0 0.0
    %997 = vmatprep.subr.mxu0 0.0
    %998 = vmatpush1.msra.mxu0 0.0
    %999 = vmatprep.subr.mxu0 0.0
    %1000 = vmatpush1.msra.mxu0 0.0
    %1001 = vmatprep.subr.mxu0 0.0
    %1002 = vmatpush1.msra.mxu0 0.0
    %1003 = vmatprep.subr.mxu0 0.0
    %1004 = vmatpush1.msra.mxu0 0.0
    %1005 = vmatprep.subr.mxu0 0.0
    %1006 = vmatpush1.msra.mxu0 0.0
    %1007 = vmatprep.subr.mxu0 0.0
    %1008 = vmatpush1.msra.mxu0 0.0
    %1009 = vmatprep.subr.mxu0 0.0
    %1010 = vmatpush1.msra.mxu0 0.0
    %1011 = vmatprep.subr.mxu0 0.0
    %1012 = vmatpush1.msra.mxu0 0.0
    %1013 = vmatprep.subr.mxu0 0.0
    %1014 = vmatpush1.msra.mxu0 0.0
    %1015 = vmatprep.subr.mxu0 0.0
    %1016 = vmatpush1.msra.mxu0 0.0
    %1017 = vmatprep.subr.mxu0 0.0
    %1018 = vmatpush1.msra.mxu0 0.0
    %1019 = vmatprep.subr.mxu0 0.0
    %1020 = vmatpush1.msra.mxu0 0.0
    %1021 = vmatprep.subr.mxu0 0.0
    %1022 = vmatpush1.msra.mxu0 0.0
    %1023 = vmatprep.subr.mxu0 0.0
    %1024 = vmatpush1.msra.mxu0 0.0
    %1025 = vmatprep.subr.mxu0 0.0
    %1026 = vmatpush1.msra.mxu0 0.0
    %1027 = vmatprep.subr.mxu0 0.0
    %1028 = vmatpush1.msra.mxu0 0.0
    %1029 = vmatprep.subr.mxu0 0.0
    %1030 = vmatpush1.msra.mxu0 0.0
    %1031 = vmatprep.subr.mxu0 0.0
    %1032 = vmatpush1.msra.mxu0 0.0
    %1033 = vmatprep.mubr.f32.mxu0 0.0
    %1034 = vmatmul.mubr.f32.gmra.mrb[0].mxu0 %v967
    %v1035 = vpop.f32.mrb[0].mxu0
    %v1036 = vadd.f32 0.0, %v1035
    %v1037 = vpop.f32.mrb[0].mxu0
    %1038 = vdwg.mxu0
    %v1039 = vrcp.pop %v1036
    %v1040 = vmul.f32 %v965, %v1039
    %v1042 = vsel %vm375, %v1040, 0
    %1044 = vmatprep.subr.mxu0 %v460
    %1045 = vmatpush1.msra.mxu0 %v459
    %1046 = vmatprep.subr.mxu0 %v464
    %1047 = vmatpush1.msra.mxu0 %v463
    %1048 = vmatprep.subr.mxu0 0.0
    %1049 = vmatpush1.msra.mxu0 0.0
    %1050 = vmatprep.subr.mxu0 0.0
    %1051 = vmatpush1.msra.mxu0 0.0
    %1052 = vmatprep.subr.mxu0 0.0
    %1053 = vmatpush1.msra.mxu0 0.0
    %1054 = vmatprep.subr.mxu0 0.0
    %1055 = vmatpush1.msra.mxu0 0.0
    %1056 = vmatprep.subr.mxu0 0.0
    %1057 = vmatpush1.msra.mxu0 0.0
    %1058 = vmatprep.subr.mxu0 0.0
    %1059 = vmatpush1.msra.mxu0 0.0
    %1060 = vmatprep.subr.mxu0 0.0
    %1061 = vmatpush1.msra.mxu0 0.0
    %1062 = vmatprep.subr.mxu0 0.0
    %1063 = vmatpush1.msra.mxu0 0.0
    %1064 = vmatprep.subr.mxu0 0.0
    %1065 = vmatpush1.msra.mxu0 0.0
    %1066 = vmatprep.subr.mxu0 0.0
    %1067 = vmatpush1.msra.mxu0 0.0
    %1068 = vmatprep.subr.mxu0 0.0
    %1069 = vmatpush1.msra.mxu0 0.0
    %1070 = vmatprep.subr.mxu0 0.0
    %1071 = vmatpush1.msra.mxu0 0.0
    %1072 = vmatprep.subr.mxu0 0.0
    %1073 = vmatpush1.msra.mxu0 0.0
    %1074 = vmatprep.subr.mxu0 0.0
    %1075 = vmatpush1.msra.mxu0 0.0
    %1076 = vmatprep.subr.mxu0 0.0
    %1077 = vmatpush1.msra.mxu0 0.0
    %1078 = vmatprep.subr.mxu0 0.0
    %1079 = vmatpush1.msra.mxu0 0.0
    %1080 = vmatprep.subr.mxu0 0.0
    %1081 = vmatpush1.msra.mxu0 0.0
    %1082 = vmatprep.subr.mxu0 0.0
    %1083 = vmatpush1.msra.mxu0 0.0
    %1084 = vmatprep.subr.mxu0 0.0
    %1085 = vmatpush1.msra.mxu0 0.0
    %1086 = vmatprep.subr.mxu0 0.0
    %1087 = vmatpush1.msra.mxu0 0.0
    %1088 = vmatprep.subr.mxu0 0.0
    %1089 = vmatpush1.msra.mxu0 0.0
    %1090 = vmatprep.subr.mxu0 0.0
    %1091 = vmatpush1.msra.mxu0 0.0
    %1092 = vmatprep.subr.mxu0 0.0
    %1093 = vmatpush1.msra.mxu0 0.0
    %1094 = vmatprep.subr.mxu0 0.0
    %1095 = vmatpush1.msra.mxu0 0.0
    %1096 = vmatprep.subr.mxu0 0.0
    %1097 = vmatpush1.msra.mxu0 0.0
    %1098 = vmatprep.subr.mxu0 0.0
    %1099 = vmatpush1.msra.mxu0 0.0
    %1100 = vmatprep.subr.mxu0 0.0
    %1101 = vmatpush1.msra.mxu0 0.0
    %1102 = vmatprep.subr.mxu0 0.0
    %1103 = vmatpush1.msra.mxu0 0.0
    %1104 = vmatprep.subr.mxu0 0.0
    %1105 = vmatpush1.msra.mxu0 0.0
    %1106 = vmatprep.subr.mxu0 0.0
    %1107 = vmatpush1.msra.mxu0 0.0
    %1108 = vmatprep.mubr.f32.mxu0 0.0
    %1109 = vmatmul.mubr.f32.gmra.mrb[0].mxu0 %v1042
    %v1110 = vpop.f32.mrb[0].mxu0
    %v1111 = vadd.f32 0.0, %v1110
    %v1112 = vpop.f32.mrb[0].mxu0
    %v1113 = vadd.f32 0.0, %v1112
    %1114 = vdwg.mxu0
    %1115 = vmatprep.subr.mxu0 %v462
    %1116 = vmatpush1.msra.mxu0 %v461
    %1117 = vmatprep.subr.mxu0 %v466
    %1118 = vmatpush1.msra.mxu0 %v465
    %1119 = vmatprep.subr.mxu0 0.0
    %1120 = vmatpush1.msra.mxu0 0.0
    %1121 = vmatprep.subr.mxu0 0.0
    %1122 = vmatpush1.msra.mxu0 0.0
    %1123 = vmatprep.subr.mxu0 0.0
    %1124 = vmatpush1.msra.mxu0 0.0
    %1125 = vmatprep.subr.mxu0 0.0
    %1126 = vmatpush1.msra.mxu0 0.0
    %1127 = vmatprep.subr.mxu0 0.0
    %1128 = vmatpush1.msra.mxu0 0.0
    %1129 = vmatprep.subr.mxu0 0.0
    %1130 = vmatpush1.msra.mxu0 0.0
    %1131 = vmatprep.subr.mxu0 0.0
    %1132 = vmatpush1.msra.mxu0 0.0
    %1133 = vmatprep.subr.mxu0 0.0
    %1134 = vmatpush1.msra.mxu0 0.0
    %1135 = vmatprep.subr.mxu0 0.0
    %1136 = vmatpush1.msra.mxu0 0.0
    %1137 = vmatprep.subr.mxu0 0.0
    %1138 = vmatpush1.msra.mxu0 0.0
    %1139 = vmatprep.subr.mxu0 0.0
    %1140 = vmatpush1.msra.mxu0 0.0
    %1141 = vmatprep.subr.mxu0 0.0
    %1142 = vmatpush1.msra.mxu0 0.0
    %1143 = vmatprep.subr.mxu0 0.0
    %1144 = vmatpush1.msra.mxu0 0.0
    %1145 = vmatprep.subr.mxu0 0.0
    %1146 = vmatpush1.msra.mxu0 0.0
    %1147 = vmatprep.subr.mxu0 0.0
    %1148 = vmatpush1.msra.mxu0 0.0
    %1149 = vmatprep.subr.mxu0 0.0
    %1150 = vmatpush1.msra.mxu0 0.0
    %1151 = vmatprep.subr.mxu0 0.0
    %1152 = vmatpush1.msra.mxu0 0.0
    %1153 = vmatprep.subr.mxu0 0.0
    %1154 = vmatpush1.msra.mxu0 0.0
    %1155 = vmatprep.subr.mxu0 0.0
    %1156 = vmatpush1.msra.mxu0 0.0
    %1157 = vmatprep.subr.mxu0 0.0
    %1158 = vmatpush1.msra.mxu0 0.0
    %1159 = vmatprep.subr.mxu0 0.0
    %1160 = vmatpush1.msra.mxu0 0.0
    %1161 = vmatprep.subr.mxu0 0.0
    %1162 = vmatpush1.msra.mxu0 0.0
    %1163 = vmatprep.subr.mxu0 0.0
    %1164 = vmatpush1.msra.mxu0 0.0
    %1165 = vmatprep.subr.mxu0 0.0
    %1166 = vmatpush1.msra.mxu0 0.0
    %1167 = vmatprep.subr.mxu0 0.0
    %1168 = vmatpush1.msra.mxu0 0.0
    %1169 = vmatprep.subr.mxu0 0.0
    %1170 = vmatpush1.msra.mxu0 0.0
    %1171 = vmatprep.subr.mxu0 0.0
    %1172 = vmatpush1.msra.mxu0 0.0
    %1173 = vmatprep.subr.mxu0 0.0
    %1174 = vmatpush1.msra.mxu0 0.0
    %1175 = vmatprep.subr.mxu0 0.0
    %1176 = vmatpush1.msra.mxu0 0.0
    %1177 = vmatprep.subr.mxu0 0.0
    %1178 = vmatpush1.msra.mxu0 0.0
    %1179 = vmatprep.mubr.f32.mxu0 0.0
    %1180 = vmatmul.mubr.f32.gmra.mrb[0].mxu0 %v1042
    %v1181 = vpop.f32.mrb[0].mxu0
    %v1182 = vadd.f32 0.0, %v1181
    %v1183 = vpop.f32.mrb[0].mxu0
    %v1184 = vadd.f32 0.0, %v1183
    %1185 = vdwg.mxu0
    %v1186 = vmul.f32 %v1111, %v864
    %1187 = vrot.lane.b32.xlu0 %v864, 32
    %v1188 = vpop.permute.xlu0 %1187
    %v1189 = vmul.f32 %v1113, %v1188
    %v1190 = vadd.f32 %v1186, %v1189
    %1191 = vrot.lane.b32.xlu0 %v864, 64
    %v1192 = vpop.permute.xlu0 %1191
    %v1193 = vmul.f32 %v1182, %v1192
    %v1194 = vadd.f32 %v1190, %v1193
    %1195 = vrot.lane.b32.xlu0 %v864, 96
    %v1196 = vpop.permute.xlu0 %1195
    %v1197 = vmul.f32 %v1184, %v1196
    %v1198 = vadd.f32 %v1194, %v1197
    %v1199 = vadd.f32 %v1198, %v864
    %1200 = vst [vmem:[#allocation5] sm:$0xff] %v1199
    // Predicated region
    $region38: #{tpu_custom_call.1} parent=1 // pred_check
      _
    $region39: #{tpu_custom_call.1} parent=1 // pred_check_branch
      %1202 = sbr.rel (0) target = $region41
    $region40: #{tpu_custom_call.1} parent=1 // pred_region
      %s1204 = ssub.s32 128, 128
      %1205 = vsyncadd [#allocation4], %s1204
      %s1207 = sshll.u32 [#allocation5], 4
      %s1208 = int_to_ptr.vmem [resolvable:$true] %s1207
      %1210 = dma.vmem_to_hbm [thread:$0]  %s1208, 128, %s8, [#allocation4]
    $region41: #{tpu_custom_call.1} parent=1 // pred_fallthru
      _
    // Predicated region
    $region42: #{tpu_custom_call.1} parent=1 // pred_check
      _
    $region43: #{tpu_custom_call.1} parent=1 // pred_check_branch
      %1212 = sbr.rel (0) target = $region45
    $region44: #{tpu_custom_call.1} parent=1 // pred_region
      %1213 = dma.done [#allocation4], 128
    $region45: #{tpu_custom_call.1} parent=1 // pred_fallthru
      _
    %1214 = vsyncpa [#allocation3], 1
    %1215 = vsyncpa [#allocation4], 1

</llo_original>
